<compile_context>
chip_gen: v7x
topology: tpu7x:2x2x1
jax: 0.10.0
libtpu: 0.0.40
codegen_flags: <defaults>
</compile_context>

<pallas_src>
import functools

import jax
import jax.numpy as jnp
from jax.experimental import pallas as pl
from jax.experimental.pallas import tpu as pltpu


# ----------------------------------------------------------------------------
# helpers
# ----------------------------------------------------------------------------
def _round_up(x, m):
    return (x + m - 1) // m * m


def _vmem_capacity_bytes():
    try:
        return int(pltpu.get_tpu_info().vmem_capacity_bytes)
    except Exception:
        # Conservative fallback (v7x-sized) so we never request more VMEM than
        # a core physically has.
        return 64 * 1024 * 1024


def _block_footprint_bytes(bt, H, D, sd, hidden_pad, n_cls, mm_bytes):
    """Rough per-grid-step VMEM residency of the fused kernel."""
    x_block = 2 * bt * H * D * 4                 # double-buffered f32 input slab
    x_cast = bt * H * D * mm_bytes               # bf16/f32 copy fed to the MXU
    feat = 2 * bt * 3 * sd * D * 4               # (Bt,3sd,D) conv result + products
    head = 2 * bt * hidden_pad * 4               # fc1 activations (f32 + mm copy)
    out = 2 * bt * n_cls * 4                     # logits block, double-buffered
    weights = 2 * (3 * sd * H + 3 * sd + D * hidden_pad + sd * hidden_pad
                   + hidden_pad + hidden_pad * n_cls + n_cls) * 4
    return x_block + x_cast + feat + head + out + weights


def _plan_tiling(batch, H, D, sd, hidden_pad, n_cls, use_bf16, block_rows=None):
    """Pick (block_rows, vmem_limit_bytes) per TPU generation."""
    vmem_cap = _vmem_capacity_bytes()
    mm_bytes = 2 if use_bf16 else 4
    if block_rows is None:
        per_row = (2 * H * D * 4 + H * D * mm_bytes + 2 * 3 * sd * D * 4
                   + 2 * hidden_pad * 4 + 2 * n_cls * 4)
        if vmem_cap > 96 * 1024 * 1024:
            # v5e / v6e: 128 MiB VMEM, single TensorCore -> bigger blocks,
            # no multi-step cap (fewer steps amortize the ~0.35 us/step cost).
            budget, max_rows, two_cores = vmem_cap // 4, 512, False
        else:
            # v7x-class: 64 MiB VMEM, 2 TensorCores.
            budget, max_rows, two_cores = vmem_cap // 4, 256, True
        bt = max(8, min(max_rows, (budget // max(per_row, 1) // 8) * 8))
        b8 = _round_up(batch, 8)
        if two_cores and b8 >= 32:
            # Keep >= 4 grid steps so the ("parallel",) batch axis load-balances
            # across the 2 TensorCores.
            bt = min(bt, max(8, (b8 // 4 // 8) * 8))
        bt = min(bt, b8)
    else:
        bt = max(8, _round_up(block_rows, 8))
    footprint = _block_footprint_bytes(bt, H, D, sd, hidden_pad, n_cls, mm_bytes)
    # ~4x the real footprint (headroom for compiler scratch), never more than
    # half the physical VMEM of this generation.
    vmem_limit = int(min(vmem_cap // 2, max(4 * footprint, 16 * 1024 * 1024)))
    return bt, vmem_limit


# ----------------------------------------------------------------------------
# fused LGSS kernel: BNet (stacked conv + channel-max + cosine) + ReLU(fc1) + fc2
# ----------------------------------------------------------------------------
def lgss_fused_kernel(x_ref, wstk_ref, bstk_ref, w1c_ref, w1s_ref, b1_ref,
                      w2_ref, b2_ref, out_ref, *, sim_dim, ratio):
    """One grid step processes a (Bt, 2*ws, D) slab of batch rows end-to-end."""
    mm_dtype = wstk_ref.dtype                         # bf16 fast path / f32 exact
    x = x_ref[...].astype(mm_dtype)                   # (Bt, 2*ws, D)
    bt = x.shape[0]

    # --- one batched MXU op for all three conv branches (stacked weights) ---
    # rows [0:sd)    = Wb            -> context conv (kernel height 2*ws)
    # rows [sd:2sd)  = [Wc | 0]      -> cos conv on the first half
    # rows [2sd:3sd) = [0 | Wc]      -> cos conv on the second half
    wstk = jnp.broadcast_to(wstk_ref[...][None], (bt,) + wstk_ref.shape)
    dn = (((2,), (1,)), ((0,), (0,)))                 # == einsum 'bch,bhd->bcd'
    feat = jax.lax.dot_general(wstk, x, dn,
                               preferred_element_type=jnp.float32)      # (Bt,3sd,D)
    feat = feat + bstk_ref[...][None]                 # stacked biases, f32

    sd = sim_dim                                      # slices at multiples of sd
    # (sd is a multiple of 8 in practice -> sublane-aligned, cheap slices)
    context = jnp.max(feat[:, :sd, :], axis=1)        # MaxPool3d over channels (Bt,D)
    p1 = feat[:, sd:2 * sd, :]
    p2 = feat[:, 2 * sd:, :]

    # cosine_similarity over the feature (D) axis:
    #   dot / max(|p1|*|p2|, 1e-8) == dot * rsqrt(max(|p1|^2*|p2|^2, 1e-16))
    dot12 = jnp.sum(p1 * p2, axis=2)                  # (Bt, sd)
    n1sq = jnp.sum(p1 * p1, axis=2)
    n2sq = jnp.sum(p2 * p2, axis=2)
    sim = dot12 * jax.lax.rsqrt(jnp.maximum(n1sq * n2sq, 1e-16))

    # --- head: ReLU(fc1) -> fc2, scaled by the LGSS branch ratio ---
    # fc1's weight is split into its context / sim halves so the (D+sd) concat
    # never has to be materialized; hidden is zero-padded to a lane multiple.
    h = jnp.dot(context.astype(mm_dtype), w1c_ref[...],
                preferred_element_type=jnp.float32)
    h = h + jnp.dot(sim.astype(mm_dtype), w1s_ref[...],
                    preferred_element_type=jnp.float32)
    h = jnp.maximum(h + b1_ref[...], 0.0)             # (Bt, hidden_pad) f32
    out = jnp.dot(h.astype(mm_dtype), w2_ref[...],
                  preferred_element_type=jnp.float32) + b2_ref[...]
    # (Bt, n_cls=2) logits are tiny (8 B/row); the narrow store is immaterial.
    out_ref[...] = (ratio * out).astype(out_ref.dtype)


# ----------------------------------------------------------------------------
# wrapper (== LGSS.forward with extract_youtube8m=True, extract_stft=False)
# ----------------------------------------------------------------------------
def lgss_forward(youtube8m_feat, bnet_params, head_params, *, youtube8m_ratio=0.8,
                 use_bf16_matmul=True, block_rows=None):
    """youtube8m_feat : (B, 2*ws, D)
       bnet_params    : (wb (sd, 2*ws), bb (sd, 1), wc (sd, ws), bc (sd, 1))
                        (Conv2d weights of shape (sd,1,K,1) flattened to (sd,K))
       head_params    : (w1 (hidden, D+sd), b1 (hidden,), w2 (n_cls, hidden), b2 (n_cls,))
    """
    # TODO(synk): stft branch (BNetSTFT/StftNet) not implemented.
    wb, bb, wc, bc = bnet_params
    w1, b1, w2, b2 = head_params
    x = youtube8m_feat
    B, H, D = x.shape
    sd, ws = wc.shape
    assert H == 2 * ws and wb.shape == (sd, H)
    assert bb.shape == (sd, 1) and bc.shape == (sd, 1)
    hidden, in_dim = w1.shape
    n_cls = w2.shape[0]
    assert in_dim == D + sd and w2.shape == (n_cls, hidden)

    mm_dtype = jnp.bfloat16 if use_bf16_matmul else jnp.float32

    # Stacked conv weight / bias (see kernel comment for the row layout).
    zeros_half = jnp.zeros((sd, ws), wb.dtype)
    w_stack = jnp.concatenate(
        [wb,
         jnp.concatenate([wc, zeros_half], axis=1),
         jnp.concatenate([zeros_half, wc], axis=1)], axis=0).astype(mm_dtype)
    b_stack = jnp.concatenate([bb, bc, bc], axis=0).astype(jnp.float32)   # (3sd, 1)

    # Head weights: split fc1 into ctx/sim halves, pad hidden -> multiple of 128
    # (exact: padded fc1 rows and fc2 cols are zero, ReLU(0)=0).
    hidden_pad = _round_up(hidden, 128)
    w1c_t = jnp.zeros((D, hidden_pad), jnp.float32).at[:, :hidden].set(w1[:, :D].T)
    w1s_t = jnp.zeros((sd, hidden_pad), jnp.float32).at[:, :hidden].set(w1[:, D:].T)
    b1r = jnp.zeros((1, hidden_pad), jnp.float32).at[:, :hidden].set(b1[None, :])
    w2_t = jnp.zeros((hidden_pad, n_cls), jnp.float32).at[:hidden, :].set(w2.T)
    b2r = b2.reshape(1, n_cls).astype(jnp.float32)
    w1c_t, w1s_t, w2_t = (w1c_t.astype(mm_dtype), w1s_t.astype(mm_dtype),
                          w2_t.astype(mm_dtype))

    bt, vmem_limit = _plan_tiling(B, H, D, sd, hidden_pad, n_cls,
                                  use_bf16_matmul, block_rows)
    grid = pl.cdiv(B, bt)          # trailing partial block handled by Pallas masking

    kernel = functools.partial(lgss_fused_kernel, sim_dim=sd,
                               ratio=float(youtube8m_ratio))
    out = pl.pallas_call(
        kernel,
        out_shape=jax.ShapeDtypeStruct((B, n_cls), jnp.float32),
        grid_spec=pltpu.PrefetchScalarGridSpec(
            num_scalar_prefetch=0,
            grid=(grid,),
            in_specs=[
                pl.BlockSpec((bt, H, D), lambda g: (g, 0, 0)),        # x row block
                pl.BlockSpec((3 * sd, H), lambda g: (0, 0)),          # stacked conv W
                pl.BlockSpec((3 * sd, 1), lambda g: (0, 0)),          # stacked conv b
                pl.BlockSpec((D, hidden_pad), lambda g: (0, 0)),      # fc1 (ctx half)
                pl.BlockSpec((sd, hidden_pad), lambda g: (0, 0)),     # fc1 (sim half)
                pl.BlockSpec((1, hidden_pad), lambda g: (0, 0)),      # fc1 bias
                pl.BlockSpec((hidden_pad, n_cls), lambda g: (0, 0)),  # fc2 weight
                pl.BlockSpec((1, n_cls), lambda g: (0, 0)),           # fc2 bias
            ],
            out_specs=pl.BlockSpec((bt, n_cls), lambda g: (g, 0)),
        ),
        compiler_params=pltpu.CompilerParams(
            dimension_semantics=("parallel",),
            vmem_limit_bytes=vmem_limit,
        ),
    )(x, w_stack, b_stack, w1c_t, w1s_t, b1r, w2_t, b2r)
    return out


# ----------------------------------------------------------------------------
# pure-JAX reference (forward-pass semantics of the PyTorch module)
# ----------------------------------------------------------------------------
def lgss_reference(x, wb, bb, wc, bc, w1, b1, w2, b2, ratio):
    ws = wc.shape[1]
    hi = jax.lax.Precision.HIGHEST
    ctx = jnp.einsum("ck,bkd->bcd", wb, x, precision=hi) + bb[None, :, :]
    context = jnp.max(ctx, axis=1)                                     # (B, D)
    p1 = jnp.einsum("ck,bkd->bcd", wc, x[:, :ws, :], precision=hi) + bc[None, :, :]
    p2 = jnp.einsum("ck,bkd->bcd", wc, x[:, ws:, :], precision=hi) + bc[None, :, :]
    dot12 = jnp.sum(p1 * p2, axis=2)
    n1 = jnp.sqrt(jnp.sum(p1 * p1, axis=2))
    n2 = jnp.sqrt(jnp.sum(p2 * p2, axis=2))
    sim = dot12 / jnp.maximum(n1 * n2, 1e-8)                           # (B, sd)
    bound = jnp.concatenate([context, sim], axis=1)
    h = jnp.maximum(jnp.dot(bound, w1.T, precision=hi) + b1, 0.0)
    return ratio * (jnp.dot(h, w2.T, precision=hi) + b2)


# ----------------------------------------------------------------------------
# demo / correctness check
# ----------------------------------------------------------------------------
if __name__ == "__main__":
    B, window_size, sim_dim, feat_dim = 16, 4, 8, 128
    hidden, n_classes = 100, 2
    youtube8m_ratio = 0.8

    key = jax.random.PRNGKey(0)
    ks = jax.random.split(key, 9)
    x = jax.random.normal(ks[0], (B, 2 * window_size, feat_dim), dtype=jnp.float32)
    # Conv2d weights (sd, 1, K, 1) flattened to (sd, K)
    wb = 0.1 * jax.random.normal(ks[1], (sim_dim, 2 * window_size), dtype=jnp.float32)
    bb = 0.1 * jax.random.normal(ks[2], (sim_dim, 1), dtype=jnp.float32)
    wc = 0.1 * jax.random.normal(ks[3], (sim_dim, window_size), dtype=jnp.float32)
    bc = 0.1 * jax.random.normal(ks[4], (sim_dim, 1), dtype=jnp.float32)
    w1 = 0.05 * jax.random.normal(ks[5], (hidden, feat_dim + sim_dim), dtype=jnp.float32)
    b1 = 0.05 * jax.random.normal(ks[6], (hidden,), dtype=jnp.float32)
    w2 = 0.05 * jax.random.normal(ks[7], (n_classes, hidden), dtype=jnp.float32)
    b2 = 0.05 * jax.random.normal(ks[8], (n_classes,), dtype=jnp.float32)

    bnet_params = (wb, bb, wc, bc)
    head_params = (w1, b1, w2, b2)
    out_ref = lgss_reference(x, wb, bb, wc, bc, w1, b1, w2, b2, youtube8m_ratio)

    # Exact f32 path (fused kernel, f32 MXU matmuls)
    out_f32 = lgss_forward(x, bnet_params, head_params,
                           youtube8m_ratio=youtube8m_ratio, use_bf16_matmul=False)
    jax.block_until_ready(out_f32)
    assert out_f32.shape == (B, n_classes)
    assert jnp.allclose(out_f32, out_ref, atol=1e-4, rtol=1e-4)

    # bf16-MXU fast path (relaxed tolerance)
    out_bf16 = lgss_forward(x, bnet_params, head_params,
                            youtube8m_ratio=youtube8m_ratio, use_bf16_matmul=True)
    jax.block_until_ready(out_bf16)
    assert jnp.allclose(out_bf16, out_ref, atol=5e-2, rtol=5e-2)

    # Non-divisible batch (exercises the pad-free cdiv grid / masked last block)
    B2 = 13
    x2 = x[:B2]
    out2 = lgss_forward(x2, bnet_params, head_params,
                        youtube8m_ratio=youtube8m_ratio, use_bf16_matmul=True)
    jax.block_until_ready(out2)
    out2_ref = lgss_reference(x2, wb, bb, wc, bc, w1, b1, w2, b2, youtube8m_ratio)
    assert out2.shape == (B2, n_classes)
    assert jnp.allclose(out2, out2_ref, atol=5e-2, rtol=5e-2)

    print("KERNEL_OK")
</pallas_src>

<mosaic_0001>
module attributes {stable_mosaic.version = 11 : i64} {
  func.func @lgss_fused_kernel(%arg0: i32, %arg1: memref<16x8x128xf32, #tpu.memory_space<vmem>>, %arg2: memref<24x8xf32, #tpu.memory_space<vmem>>, %arg3: memref<24x1xf32, #tpu.memory_space<vmem>>, %arg4: memref<128x128xf32, #tpu.memory_space<vmem>>, %arg5: memref<8x128xf32, #tpu.memory_space<vmem>>, %arg6: memref<1x128xf32, #tpu.memory_space<vmem>>, %arg7: memref<128x2xf32, #tpu.memory_space<vmem>>, %arg8: memref<1x2xf32, #tpu.memory_space<vmem>>, %arg9: memref<16x2xf32, #tpu.memory_space<vmem>>) attributes {dimension_semantics = [#tpu.dimension_semantics<parallel>], iteration_bounds = array<i64: 1>, scalar_prefetch = 0 : i64, scratch_operands = 0 : i64, tpu.core_type = #tpu.core_type<tc>, window_params = [{transform_indices = @transform_0, window_bounds = array<i64: 16, 8, 128>}, {pipeline_mode = #tpu.pipeline_mode<synchronous>, transform_indices = @transform_1, window_bounds = array<i64: 24, 8>}, {pipeline_mode = #tpu.pipeline_mode<synchronous>, transform_indices = @transform_2, window_bounds = array<i64: 24, 1>}, {pipeline_mode = #tpu.pipeline_mode<synchronous>, transform_indices = @transform_3, window_bounds = array<i64: 128, 128>}, {pipeline_mode = #tpu.pipeline_mode<synchronous>, transform_indices = @transform_4, window_bounds = array<i64: 8, 128>}, {pipeline_mode = #tpu.pipeline_mode<synchronous>, transform_indices = @transform_5, window_bounds = array<i64: 1, 128>}, {pipeline_mode = #tpu.pipeline_mode<synchronous>, transform_indices = @transform_6, window_bounds = array<i64: 128, 2>}, {pipeline_mode = #tpu.pipeline_mode<synchronous>, transform_indices = @transform_7, window_bounds = array<i64: 1, 2>}, {transform_indices = @transform_8, window_bounds = array<i64: 16, 2>}]} {
    %c0 = arith.constant 0 : index
    %c0_0 = arith.constant 0 : index
    %c0_1 = arith.constant 0 : index
    %0 = vector.load %arg1[%c0, %c0_0, %c0_1] : memref<16x8x128xf32, #tpu.memory_space<vmem>>, vector<16x8x128xf32>
    %c0_2 = arith.constant 0 : index
    %c0_3 = arith.constant 0 : index
    %1 = vector.load %arg2[%c0_2, %c0_3] : memref<24x8xf32, #tpu.memory_space<vmem>>, vector<24x8xf32>
    %2 = vector.shape_cast %1 : vector<24x8xf32> to vector<1x24x8xf32>
    %3 = vector.shape_cast %2 : vector<1x24x8xf32> to vector<1x24x8xf32>
    %4 = vector.broadcast %3 : vector<1x24x8xf32> to vector<16x24x8xf32>
    %cst = arith.constant dense<0.000000e+00> : vector<16x24x128xf32>
    %5 = tpu.matmul %4, %0, %cst {dimension_numbers = #tpu.dot_dimension_numbers<[2], [1], [1], [2], [0, 0, 0, 1, 1, 2], [0], [0]>} : vector<16x24x8xf32>, vector<16x8x128xf32>, vector<16x24x128xf32> -> vector<16x24x128xf32>
    %c0_4 = arith.constant 0 : index
    %c0_5 = arith.constant 0 : index
    %6 = vector.load %arg3[%c0_4, %c0_5] : memref<24x1xf32, #tpu.memory_space<vmem>>, vector<24x1xf32>
    %7 = vector.shape_cast %6 : vector<24x1xf32> to vector<1x24x1xf32>
    %8 = vector.broadcast %7 : vector<1x24x1xf32> to vector<16x24x128xf32>
    %9 = arith.addf %5, %8 : vector<16x24x128xf32>
    %10 = vector.extract_strided_slice %9 {offsets = [0, 0, 0], sizes = [16, 8, 128], strides = [1, 1, 1]} : vector<16x24x128xf32> to vector<16x8x128xf32>
    %cst_6 = arith.constant dense<0xFF800000> : vector<16x128xf32>
    %11 = vector.multi_reduction <maximumf>, %10, %cst_6 [1] : vector<16x8x128xf32> to vector<16x128xf32>
    %12 = vector.extract_strided_slice %9 {offsets = [0, 8, 0], sizes = [16, 8, 128], strides = [1, 1, 1]} : vector<16x24x128xf32> to vector<16x8x128xf32>
    %13 = vector.extract_strided_slice %9 {offsets = [0, 16, 0], sizes = [16, 8, 128], strides = [1, 1, 1]} : vector<16x24x128xf32> to vector<16x8x128xf32>
    %14 = arith.mulf %12, %13 : vector<16x8x128xf32>
    %cst_7 = arith.constant dense<0.000000e+00> : vector<16x8xf32>
    %15 = vector.multi_reduction <add>, %14, %cst_7 [2] : vector<16x8x128xf32> to vector<16x8xf32>
    %16 = arith.mulf %12, %12 : vector<16x8x128xf32>
    %cst_8 = arith.constant dense<0.000000e+00> : vector<16x8xf32>
    %17 = vector.multi_reduction <add>, %16, %cst_8 [2] : vector<16x8x128xf32> to vector<16x8xf32>
    %18 = arith.mulf %13, %13 : vector<16x8x128xf32>
    %cst_9 = arith.constant dense<0.000000e+00> : vector<16x8xf32>
    %19 = vector.multi_reduction <add>, %18, %cst_9 [2] : vector<16x8x128xf32> to vector<16x8xf32>
    %20 = arith.mulf %17, %19 : vector<16x8xf32>
    %cst_10 = arith.constant 1.000000e-16 : f32
    %21 = vector.broadcast %cst_10 : f32 to vector<16x8xf32>
    %22 = arith.maximumf %20, %21 : vector<16x8xf32>
    %23 = math.rsqrt %22 : vector<16x8xf32>
    %24 = arith.mulf %15, %23 : vector<16x8xf32>
    %c0_11 = arith.constant 0 : index
    %c0_12 = arith.constant 0 : index
    %25 = vector.load %arg4[%c0_11, %c0_12] : memref<128x128xf32, #tpu.memory_space<vmem>>, vector<128x128xf32>
    %cst_13 = arith.constant dense<0.000000e+00> : vector<16x128xf32>
    %26 = tpu.matmul %11, %25, %cst_13 {dimension_numbers = #tpu.dot_dimension_numbers<[1], [0], [0], [1], [0, 0, 1, 1], [], []>} : vector<16x128xf32>, vector<128x128xf32>, vector<16x128xf32> -> vector<16x128xf32>
    %c0_14 = arith.constant 0 : index
    %c0_15 = arith.constant 0 : index
    %27 = vector.load %arg5[%c0_14, %c0_15] : memref<8x128xf32, #tpu.memory_space<vmem>>, vector<8x128xf32>
    %cst_16 = arith.constant dense<0.000000e+00> : vector<16x128xf32>
    %28 = tpu.matmul %24, %27, %cst_16 {dimension_numbers = #tpu.dot_dimension_numbers<[1], [0], [0], [1], [0, 0, 1, 1], [], []>} : vector<16x8xf32>, vector<8x128xf32>, vector<16x128xf32> -> vector<16x128xf32>
    %29 = arith.addf %26, %28 : vector<16x128xf32>
    %c0_17 = arith.constant 0 : index
    %c0_18 = arith.constant 0 : index
    %30 = vector.load %arg6[%c0_17, %c0_18] : memref<1x128xf32, #tpu.memory_space<vmem>>, vector<1x128xf32>
    %31 = vector.broadcast %30 : vector<1x128xf32> to vector<16x128xf32>
    %32 = arith.addf %29, %31 : vector<16x128xf32>
    %cst_19 = arith.constant 0.000000e+00 : f32
    %33 = vector.broadcast %cst_19 : f32 to vector<16x128xf32>
    %34 = arith.maximumf %32, %33 : vector<16x128xf32>
    %c0_20 = arith.constant 0 : index
    %c0_21 = arith.constant 0 : index
    %35 = vector.load %arg7[%c0_20, %c0_21] : memref<128x2xf32, #tpu.memory_space<vmem>>, vector<128x2xf32>
    %cst_22 = arith.constant dense<0.000000e+00> : vector<16x2xf32>
    %36 = tpu.matmul %34, %35, %cst_22 {dimension_numbers = #tpu.dot_dimension_numbers<[1], [0], [0], [1], [0, 0, 1, 1], [], []>} : vector<16x128xf32>, vector<128x2xf32>, vector<16x2xf32> -> vector<16x2xf32>
    %c0_23 = arith.constant 0 : index
    %c0_24 = arith.constant 0 : index
    %37 = vector.load %arg8[%c0_23, %c0_24] : memref<1x2xf32, #tpu.memory_space<vmem>>, vector<1x2xf32>
    %38 = vector.broadcast %37 : vector<1x2xf32> to vector<16x2xf32>
    %39 = arith.addf %36, %38 : vector<16x2xf32>
    %cst_25 = arith.constant 8.000000e-01 : f32
    %40 = vector.broadcast %cst_25 : f32 to vector<16x2xf32>
    %41 = arith.mulf %40, %39 : vector<16x2xf32>
    %c0_26 = arith.constant 0 : index
    %c0_27 = arith.constant 0 : index
    %42 = vector.load %arg9[%c0_26, %c0_27] : memref<16x2xf32, #tpu.memory_space<vmem>>, vector<16x2xf32>
    tpu.vector_store %arg9[%c0_26, %c0_27], %41 {strides = array<i32>} : memref<16x2xf32, #tpu.memory_space<vmem>>, vector<16x2xf32>,
    return
  }
  func.func @transform_0(%arg0: i32) -> (i32, i32, i32) {
    %c0_i32 = arith.constant 0 : i32
    %c0_i32_0 = arith.constant 0 : i32
    %c0_i32_1 = arith.constant 0 : i32
    return %arg0, %c0_i32, %c0_i32_0 : i32, i32, i32
  }
  func.func @transform_1(%arg0: i32) -> (i32, i32) {
    %c0_i32 = arith.constant 0 : i32
    %c0_i32_0 = arith.constant 0 : i32
    %c0_i32_1 = arith.constant 0 : i32
    return %c0_i32, %c0_i32_0 : i32, i32
  }
  func.func @transform_2(%arg0: i32) -> (i32, i32) {
    %c0_i32 = arith.constant 0 : i32
    %c0_i32_0 = arith.constant 0 : i32
    %c0_i32_1 = arith.constant 0 : i32
    return %c0_i32, %c0_i32_0 : i32, i32
  }
  func.func @transform_3(%arg0: i32) -> (i32, i32) {
    %c0_i32 = arith.constant 0 : i32
    %c0_i32_0 = arith.constant 0 : i32
    %c0_i32_1 = arith.constant 0 : i32
    return %c0_i32, %c0_i32_0 : i32, i32
  }
  func.func @transform_4(%arg0: i32) -> (i32, i32) {
    %c0_i32 = arith.constant 0 : i32
    %c0_i32_0 = arith.constant 0 : i32
    %c0_i32_1 = arith.constant 0 : i32
    return %c0_i32, %c0_i32_0 : i32, i32
  }
  func.func @transform_5(%arg0: i32) -> (i32, i32) {
    %c0_i32 = arith.constant 0 : i32
    %c0_i32_0 = arith.constant 0 : i32
    %c0_i32_1 = arith.constant 0 : i32
    return %c0_i32, %c0_i32_0 : i32, i32
  }
  func.func @transform_6(%arg0: i32) -> (i32, i32) {
    %c0_i32 = arith.constant 0 : i32
    %c0_i32_0 = arith.constant 0 : i32
    %c0_i32_1 = arith.constant 0 : i32
    return %c0_i32, %c0_i32_0 : i32, i32
  }
  func.func @transform_7(%arg0: i32) -> (i32, i32) {
    %c0_i32 = arith.constant 0 : i32
    %c0_i32_0 = arith.constant 0 : i32
    %c0_i32_1 = arith.constant 0 : i32
    return %c0_i32, %c0_i32_0 : i32, i32
  }
  func.func @transform_8(%arg0: i32) -> (i32, i32) {
    %c0_i32 = arith.constant 0 : i32
    %c0_i32_0 = arith.constant 0 : i32
    return %arg0, %c0_i32 : i32, i32
  }
}

</mosaic_0001>

<llo_original>
// kernel: tpu_custom_call.1
$region0: #{tpu_custom_call.1}
  #allocation0 [shape = 'u32[]', space=smem, size = 0x4, offset = 0x4, fixed_abs, tag = 'smem constant byte address 0x4 - core index']
  #allocation1 [shape = 'u32[144,128]{1,0:T(1,128)}', space=vmem, size = 0x12000, scoped, tag = 'internal scratch']
  %s0 = inlined_call_operand.vmem [shape: f32[16,8,128], index: 0, kind: input, shape index: {}]
  %s1 = inlined_call_operand.vmem [shape: f32[24,8], index: 1, kind: input, shape index: {}]
  %s2 = inlined_call_operand.vmem [shape: f32[24,1], index: 2, kind: input, shape index: {}]
  %s3 = inlined_call_operand.hbm [shape: f32[128,128], index: 3, kind: input, shape index: {}]
  %s4 = inlined_call_operand.vmem [shape: f32[8,128], index: 4, kind: input, shape index: {}]
  %s5 = inlined_call_operand.vmem [shape: f32[1,128], index: 5, kind: input, shape index: {}]
  %s6 = inlined_call_operand.vmem [shape: f32[128,2], index: 6, kind: input, shape index: {}]
  %s7 = inlined_call_operand.vmem [shape: f32[1,2], index: 7, kind: input, shape index: {}]
  %s8 = inlined_call_operand.vmem [shape: f32[16,2], index: 8, kind: output, shape index: {}]
  %s9 = sld [smem:[#allocation0]]
  $region46: #{tpu_custom_call.1} parent=0
    _
  %s11 = ssub.s32 1, %s9
  %s12 = scalar_select 0, %s11, %s9
  $region1: #{tpu_custom_call.1} parent=0
    #allocation2 [shape = 'u8[65536]{0}', space=vmem, size = 0x10000, scoped, tag = 'input window, operand 3, single buffered']
    #allocation3 [shape = 's32[1]{0}', space=sflag, size = 0x4, scoped, tag = 'scoped memory for tpu_custom_call.1']
    %13 = vsyncpa [#allocation3], 0
    // Predicated region
    $region2: #{tpu_custom_call.1} parent=1 // pred_check
      _
    $region3: #{tpu_custom_call.1} parent=1 // pred_check_branch
      %15 = sbr.rel (0) target = $region5
    $region4: #{tpu_custom_call.1} parent=1 // pred_region
      _
    $region5: #{tpu_custom_call.1} parent=1 // pred_fallthru
      _
    // Predicated region
    $region6: #{tpu_custom_call.1} parent=1 // pred_check
      _
    $region7: #{tpu_custom_call.1} parent=1 // pred_check_branch
      %17 = sbr.rel (0) target = $region9
    $region8: #{tpu_custom_call.1} parent=1 // pred_region
      _
    $region9: #{tpu_custom_call.1} parent=1 // pred_fallthru
      _
    // Predicated region
    $region10: #{tpu_custom_call.1} parent=1 // pred_check
      _
    $region11: #{tpu_custom_call.1} parent=1 // pred_check_branch
      %19 = sbr.rel (0) target = $region13
    $region12: #{tpu_custom_call.1} parent=1 // pred_region
      _
    $region13: #{tpu_custom_call.1} parent=1 // pred_fallthru
      _
    // Predicated region
    $region14: #{tpu_custom_call.1} parent=1 // pred_check
      _
    $region15: #{tpu_custom_call.1} parent=1 // pred_check_branch
      %21 = sbr.rel (0) target = $region17
    $region16: #{tpu_custom_call.1} parent=1 // pred_region
      %s23 = ssub.s32 2048, 2048
      %24 = vsyncadd [#allocation3], %s23
      %s25 = sshll.u32 [#allocation2], 4
      %s26 = int_to_ptr.vmem [resolvable:$true] %s25
      %31 = dma.hbm_to_vmem [thread:$0]  %s3, 2048, %s26, [#allocation3], 128, 128, 8
    $region17: #{tpu_custom_call.1} parent=1 // pred_fallthru
      _
    // Predicated region
    $region18: #{tpu_custom_call.1} parent=1 // pred_check
      _
    $region19: #{tpu_custom_call.1} parent=1 // pred_check_branch
      %33 = sbr.rel (0) target = $region21
    $region20: #{tpu_custom_call.1} parent=1 // pred_region
      _
    $region21: #{tpu_custom_call.1} parent=1 // pred_fallthru
      _
    // Predicated region
    $region22: #{tpu_custom_call.1} parent=1 // pred_check
      _
    $region23: #{tpu_custom_call.1} parent=1 // pred_check_branch
      %35 = sbr.rel (0) target = $region25
    $region24: #{tpu_custom_call.1} parent=1 // pred_region
      _
    $region25: #{tpu_custom_call.1} parent=1 // pred_fallthru
      _
    // Predicated region
    $region26: #{tpu_custom_call.1} parent=1 // pred_check
      _
    $region27: #{tpu_custom_call.1} parent=1 // pred_check_branch
      %37 = sbr.rel (0) target = $region29
    $region28: #{tpu_custom_call.1} parent=1 // pred_region
      _
    $region29: #{tpu_custom_call.1} parent=1 // pred_fallthru
      _
    // Predicated region
    $region30: #{tpu_custom_call.1} parent=1 // pred_check
      _
    $region31: #{tpu_custom_call.1} parent=1 // pred_check_branch
      %39 = sbr.rel (0) target = $region33
    $region32: #{tpu_custom_call.1} parent=1 // pred_region
      _
    $region33: #{tpu_custom_call.1} parent=1 // pred_fallthru
      _
    // Predicated region
    $region34: #{tpu_custom_call.1} parent=1 // pred_check
      _
    $region35: #{tpu_custom_call.1} parent=1 // pred_check_branch
      %41 = sbr.rel (0) target = $region37
    $region36: #{tpu_custom_call.1} parent=1 // pred_region
      %42 = dma.done [#allocation3], 2048
    $region37: #{tpu_custom_call.1} parent=1 // pred_fallthru
      _
    %v43 = vld [vmem:[%s0] sm:$0xff]
    %v44 = vld [vmem:[%s0 + $0x8] sm:$0xff]
    %v45 = vld [vmem:[%s0 + $0x10] sm:$0xff]
    %v46 = vld [vmem:[%s0 + $0x18] sm:$0xff]
    %v47 = vld [vmem:[%s0 + $0x20] sm:$0xff]
    %v48 = vld [vmem:[%s0 + $0x28] sm:$0xff]
    %v49 = vld [vmem:[%s0 + $0x30] sm:$0xff]
    %v50 = vld [vmem:[%s0 + $0x38] sm:$0xff]
    %v51 = vld [vmem:[%s0 + $0x40] sm:$0xff]
    %v52 = vld [vmem:[%s0 + $0x48] sm:$0xff]
    %v53 = vld [vmem:[%s0 + $0x50] sm:$0xff]
    %v54 = vld [vmem:[%s0 + $0x58] sm:$0xff]
    %v55 = vld [vmem:[%s0 + $0x60] sm:$0xff]
    %v56 = vld [vmem:[%s0 + $0x68] sm:$0xff]
    %v57 = vld [vmem:[%s0 + $0x70] sm:$0xff]
    %v58 = vld [vmem:[%s0 + $0x78] sm:$0xff]
    %v59 = vld [vmem:[%s1] sm:$0xff]
    %v60 = vld [vmem:[%s1 + $0x8] sm:$0xff]
    %v61 = vld [vmem:[%s1 + $0x10] sm:$0xff]
    %v62 = vld [vmem:[%s2] sm:$0xff]
    %v63 = vld [vmem:[%s2 + $0x8] sm:$0xff]
    %v64 = vld [vmem:[%s2 + $0x10] sm:$0xff]
    %66 = vset.pattern.permute.xlu0 0
    %67 = vperm.xlu0 %66, %v62
    %v68 = vpop.permute.xlu0 %67
    %71 = vset.pattern.permute.xlu0 0
    %72 = vperm.xlu0 %71, %v63
    %v73 = vpop.permute.xlu0 %72
    %76 = vset.pattern.permute.xlu0 0
    %77 = vperm.xlu0 %76, %v64
    %v78 = vpop.permute.xlu0 %77
    %vm80 = vcmask 64512
    %v82 = vsel %vm80, %v59, 0
    %v85 = vsel %vm80, %v60, 0
    %v88 = vsel %vm80, %v61, 0
    %90 = vmatprep.subr.mxu0 0.0
    %91 = vmatpush1.msra.mxu0 %v43
    %92 = vmatprep.subr.mxu0 0.0
    %93 = vmatpush1.msra.mxu0 0.0
    %94 = vmatprep.subr.mxu0 0.0
    %95 = vmatpush1.msra.mxu0 0.0
    %96 = vmatprep.subr.mxu0 0.0
    %97 = vmatpush1.msra.mxu0 0.0
    %98 = vmatprep.subr.mxu0 0.0
    %99 = vmatpush1.msra.mxu0 0.0
    %100 = vmatprep.subr.mxu0 0.0
    %101 = vmatpush1.msra.mxu0 0.0
    %102 = vmatprep.subr.mxu0 0.0
    %103 = vmatpush1.msra.mxu0 0.0
    %104 = vmatprep.subr.mxu0 0.0
    %105 = vmatpush1.msra.mxu0 0.0
    %106 = vmatprep.subr.mxu0 0.0
    %107 = vmatpush1.msra.mxu0 0.0
    %108 = vmatprep.subr.mxu0 0.0
    %109 = vmatpush1.msra.mxu0 0.0
    %110 = vmatprep.subr.mxu0 0.0
    %111 = vmatpush1.msra.mxu0 0.0
    %112 = vmatprep.subr.mxu0 0.0
    %113 = vmatpush1.msra.mxu0 0.0
    %114 = vmatprep.subr.mxu0 0.0
    %115 = vmatpush1.msra.mxu0 0.0
    %116 = vmatprep.subr.mxu0 0.0
    %117 = vmatpush1.msra.mxu0 0.0
    %118 = vmatprep.subr.mxu0 0.0
    %119 = vmatpush1.msra.mxu0 0.0
    %120 = vmatprep.subr.mxu0 0.0
    %121 = vmatpush1.msra.mxu0 0.0
    %122 = vmatprep.subr.mxu0 0.0
    %123 = vmatpush1.msra.mxu0 0.0
    %124 = vmatprep.subr.mxu0 0.0
    %125 = vmatpush1.msra.mxu0 0.0
    %126 = vmatprep.subr.mxu0 0.0
    %127 = vmatpush1.msra.mxu0 0.0
    %128 = vmatprep.subr.mxu0 0.0
    %129 = vmatpush1.msra.mxu0 0.0
    %130 = vmatprep.subr.mxu0 0.0
    %131 = vmatpush1.msra.mxu0 0.0
    %132 = vmatprep.subr.mxu0 0.0
    %133 = vmatpush1.msra.mxu0 0.0
    %134 = vmatprep.subr.mxu0 0.0
    %135 = vmatpush1.msra.mxu0 0.0
    %136 = vmatprep.subr.mxu0 0.0
    %137 = vmatpush1.msra.mxu0 0.0
    %138 = vmatprep.subr.mxu0 0.0
    %139 = vmatpush1.msra.mxu0 0.0
    %140 = vmatprep.subr.mxu0 0.0
    %141 = vmatpush1.msra.mxu0 0.0
    %142 = vmatprep.subr.mxu0 0.0
    %143 = vmatpush1.msra.mxu0 0.0
    %144 = vmatprep.subr.mxu0 0.0
    %145 = vmatpush1.msra.mxu0 0.0
    %146 = vmatprep.subr.mxu0 0.0
    %147 = vmatpush1.msra.mxu0 0.0
    %148 = vmatprep.subr.mxu0 0.0
    %149 = vmatpush1.msra.mxu0 0.0
    %150 = vmatprep.subr.mxu0 0.0
    %151 = vmatpush1.msra.mxu0 0.0
    %152 = vmatprep.subr.mxu0 0.0
    %153 = vmatpush1.msra.mxu0 0.0
    %154 = vmatprep.mubr.f32.mxu0 0.0
    %155 = vmatmul.mubr.f32.gmra.mrb[0].mxu0 %v82
    %v156 = vpop.f32.mrb[0].mxu0
    %v157 = vadd.f32 %v68, %v156
    %v158 = vpop.f32.mrb[0].mxu0
    %159 = vmatprep.mubr.f32.mxu0 0.0
    %160 = vmatmul.mubr.f32.gmra.mrb[0].mxu0 %v85
    %v161 = vpop.f32.mrb[0].mxu0
    %v162 = vadd.f32 %v73, %v161
    %v163 = vpop.f32.mrb[0].mxu0
    %164 = vmatprep.mubr.f32.mxu0 0.0
    %165 = vmatmul.mubr.f32.gmra.mrb[0].mxu0 %v88
    %v166 = vpop.f32.mrb[0].mxu0
    %v167 = vadd.f32 %v78, %v166
    %v168 = vpop.f32.mrb[0].mxu0
    %169 = vdwg.mxu0
    %170 = vmatprep.subr.mxu0 0.0
    %171 = vmatpush1.msra.mxu0 %v44
    %172 = vmatprep.subr.mxu0 0.0
    %173 = vmatpush1.msra.mxu0 0.0
    %174 = vmatprep.subr.mxu0 0.0
    %175 = vmatpush1.msra.mxu0 0.0
    %176 = vmatprep.subr.mxu0 0.0
    %177 = vmatpush1.msra.mxu0 0.0
    %178 = vmatprep.subr.mxu0 0.0
    %179 = vmatpush1.msra.mxu0 0.0
    %180 = vmatprep.subr.mxu0 0.0
    %181 = vmatpush1.msra.mxu0 0.0
    %182 = vmatprep.subr.mxu0 0.0
    %183 = vmatpush1.msra.mxu0 0.0
    %184 = vmatprep.subr.mxu0 0.0
    %185 = vmatpush1.msra.mxu0 0.0
    %186 = vmatprep.subr.mxu0 0.0
    %187 = vmatpush1.msra.mxu0 0.0
    %188 = vmatprep.subr.mxu0 0.0
    %189 = vmatpush1.msra.mxu0 0.0
    %190 = vmatprep.subr.mxu0 0.0
    %191 = vmatpush1.msra.mxu0 0.0
    %192 = vmatprep.subr.mxu0 0.0
    %193 = vmatpush1.msra.mxu0 0.0
    %194 = vmatprep.subr.mxu0 0.0
    %195 = vmatpush1.msra.mxu0 0.0
    %196 = vmatprep.subr.mxu0 0.0
    %197 = vmatpush1.msra.mxu0 0.0
    %198 = vmatprep.subr.mxu0 0.0
    %199 = vmatpush1.msra.mxu0 0.0
    %200 = vmatprep.subr.mxu0 0.0
    %201 = vmatpush1.msra.mxu0 0.0
    %202 = vmatprep.subr.mxu0 0.0
    %203 = vmatpush1.msra.mxu0 0.0
    %204 = vmatprep.subr.mxu0 0.0
    %205 = vmatpush1.msra.mxu0 0.0
    %206 = vmatprep.subr.mxu0 0.0
    %207 = vmatpush1.msra.mxu0 0.0
    %208 = vmatprep.subr.mxu0 0.0
    %209 = vmatpush1.msra.mxu0 0.0
    %210 = vmatprep.subr.mxu0 0.0
    %211 = vmatpush1.msra.mxu0 0.0
    %212 = vmatprep.subr.mxu0 0.0
    %213 = vmatpush1.msra.mxu0 0.0
    %214 = vmatprep.subr.mxu0 0.0
    %215 = vmatpush1.msra.mxu0 0.0
    %216 = vmatprep.subr.mxu0 0.0
    %217 = vmatpush1.msra.mxu0 0.0
    %218 = vmatprep.subr.mxu0 0.0
    %219 = vmatpush1.msra.mxu0 0.0
    %220 = vmatprep.subr.mxu0 0.0
    %221 = vmatpush1.msra.mxu0 0.0
    %222 = vmatprep.subr.mxu0 0.0
    %223 = vmatpush1.msra.mxu0 0.0
    %224 = vmatprep.subr.mxu0 0.0
    %225 = vmatpush1.msra.mxu0 0.0
    %226 = vmatprep.subr.mxu0 0.0
    %227 = vmatpush1.msra.mxu0 0.0
    %228 = vmatprep.subr.mxu0 0.0
    %229 = vmatpush1.msra.mxu0 0.0
    %230 = vmatprep.subr.mxu0 0.0
    %231 = vmatpush1.msra.mxu0 0.0
    %232 = vmatprep.subr.mxu0 0.0
    %233 = vmatpush1.msra.mxu0 0.0
    %234 = vmatprep.mubr.f32.mxu0 0.0
    %235 = vmatmul.mubr.f32.gmra.mrb[0].mxu0 %v82
    %v236 = vpop.f32.mrb[0].mxu0
    %v237 = vadd.f32 %v68, %v236
    %v238 = vpop.f32.mrb[0].mxu0
    %239 = vmatprep.mubr.f32.mxu0 0.0
    %240 = vmatmul.mubr.f32.gmra.mrb[0].mxu0 %v85
    %v241 = vpop.f32.mrb[0].mxu0
    %v242 = vadd.f32 %v73, %v241
    %v243 = vpop.f32.mrb[0].mxu0
    %244 = vmatprep.mubr.f32.mxu0 0.0
    %245 = vmatmul.mubr.f32.gmra.mrb[0].mxu0 %v88
    %v246 = vpop.f32.mrb[0].mxu0
    %v247 = vadd.f32 %v78, %v246
    %v248 = vpop.f32.mrb[0].mxu0
    %249 = vdwg.mxu0
    %250 = vmatprep.subr.mxu0 0.0
    %251 = vmatpush1.msra.mxu0 %v45
    %252 = vmatprep.subr.mxu0 0.0
    %253 = vmatpush1.msra.mxu0 0.0
    %254 = vmatprep.subr.mxu0 0.0
    %255 = vmatpush1.msra.mxu0 0.0
    %256 = vmatprep.subr.mxu0 0.0
    %257 = vmatpush1.msra.mxu0 0.0
    %258 = vmatprep.subr.mxu0 0.0
    %259 = vmatpush1.msra.mxu0 0.0
    %260 = vmatprep.subr.mxu0 0.0
    %261 = vmatpush1.msra.mxu0 0.0
    %262 = vmatprep.subr.mxu0 0.0
    %263 = vmatpush1.msra.mxu0 0.0
    %264 = vmatprep.subr.mxu0 0.0
    %265 = vmatpush1.msra.mxu0 0.0
    %266 = vmatprep.subr.mxu0 0.0
    %267 = vmatpush1.msra.mxu0 0.0
    %268 = vmatprep.subr.mxu0 0.0
    %269 = vmatpush1.msra.mxu0 0.0
    %270 = vmatprep.subr.mxu0 0.0
    %271 = vmatpush1.msra.mxu0 0.0
    %272 = vmatprep.subr.mxu0 0.0
    %273 = vmatpush1.msra.mxu0 0.0
    %274 = vmatprep.subr.mxu0 0.0
    %275 = vmatpush1.msra.mxu0 0.0
    %276 = vmatprep.subr.mxu0 0.0
    %277 = vmatpush1.msra.mxu0 0.0
    %278 = vmatprep.subr.mxu0 0.0
    %279 = vmatpush1.msra.mxu0 0.0
    %280 = vmatprep.subr.mxu0 0.0
    %281 = vmatpush1.msra.mxu0 0.0
    %282 = vmatprep.subr.mxu0 0.0
    %283 = vmatpush1.msra.mxu0 0.0
    %284 = vmatprep.subr.mxu0 0.0
    %285 = vmatpush1.msra.mxu0 0.0
    %286 = vmatprep.subr.mxu0 0.0
    %287 = vmatpush1.msra.mxu0 0.0
    %288 = vmatprep.subr.mxu0 0.0
    %289 = vmatpush1.msra.mxu0 0.0
    %290 = vmatprep.subr.mxu0 0.0
    %291 = vmatpush1.msra.mxu0 0.0
    %292 = vmatprep.subr.mxu0 0.0
    %293 = vmatpush1.msra.mxu0 0.0
    %294 = vmatprep.subr.mxu0 0.0
    %295 = vmatpush1.msra.mxu0 0.0
    %296 = vmatprep.subr.mxu0 0.0
    %297 = vmatpush1.msra.mxu0 0.0
    %298 = vmatprep.subr.mxu0 0.0
    %299 = vmatpush1.msra.mxu0 0.0
    %300 = vmatprep.subr.mxu0 0.0
    %301 = vmatpush1.msra.mxu0 0.0
    %302 = vmatprep.subr.mxu0 0.0
    %303 = vmatpush1.msra.mxu0 0.0
    %304 = vmatprep.subr.mxu0 0.0
    %305 = vmatpush1.msra.mxu0 0.0
    %306 = vmatprep.subr.mxu0 0.0
    %307 = vmatpush1.msra.mxu0 0.0
    %308 = vmatprep.subr.mxu0 0.0
    %309 = vmatpush1.msra.mxu0 0.0
    %310 = vmatprep.subr.mxu0 0.0
    %311 = vmatpush1.msra.mxu0 0.0
    %312 = vmatprep.subr.mxu0 0.0
    %313 = vmatpush1.msra.mxu0 0.0
    %314 = vmatprep.mubr.f32.mxu0 0.0
    %315 = vmatmul.mubr.f32.gmra.mrb[0].mxu0 %v82
    %v316 = vpop.f32.mrb[0].mxu0
    %v317 = vadd.f32 %v68, %v316
    %v318 = vpop.f32.mrb[0].mxu0
    %319 = vmatprep.mubr.f32.mxu0 0.0
    %320 = vmatmul.mubr.f32.gmra.mrb[0].mxu0 %v85
    %v321 = vpop.f32.mrb[0].mxu0
    %v322 = vadd.f32 %v73, %v321
    %v323 = vpop.f32.mrb[0].mxu0
    %324 = vmatprep.mubr.f32.mxu0 0.0
    %325 = vmatmul.mubr.f32.gmra.mrb[0].mxu0 %v88
    %v326 = vpop.f32.mrb[0].mxu0
    %v327 = vadd.f32 %v78, %v326
    %v328 = vpop.f32.mrb[0].mxu0
    %329 = vdwg.mxu0
    %330 = vmatprep.subr.mxu0 0.0
    %331 = vmatpush1.msra.mxu0 %v46
    %332 = vmatprep.subr.mxu0 0.0
    %333 = vmatpush1.msra.mxu0 0.0
    %334 = vmatprep.subr.mxu0 0.0
    %335 = vmatpush1.msra.mxu0 0.0
    %336 = vmatprep.subr.mxu0 0.0
    %337 = vmatpush1.msra.mxu0 0.0
    %338 = vmatprep.subr.mxu0 0.0
    %339 = vmatpush1.msra.mxu0 0.0
    %340 = vmatprep.subr.mxu0 0.0
    %341 = vmatpush1.msra.mxu0 0.0
    %342 = vmatprep.subr.mxu0 0.0
    %343 = vmatpush1.msra.mxu0 0.0
    %344 = vmatprep.subr.mxu0 0.0
    %345 = vmatpush1.msra.mxu0 0.0
    %346 = vmatprep.subr.mxu0 0.0
    %347 = vmatpush1.msra.mxu0 0.0
    %348 = vmatprep.subr.mxu0 0.0
    %349 = vmatpush1.msra.mxu0 0.0
    %350 = vmatprep.subr.mxu0 0.0
    %351 = vmatpush1.msra.mxu0 0.0
    %352 = vmatprep.subr.mxu0 0.0
    %353 = vmatpush1.msra.mxu0 0.0
    %354 = vmatprep.subr.mxu0 0.0
    %355 = vmatpush1.msra.mxu0 0.0
    %356 = vmatprep.subr.mxu0 0.0
    %357 = vmatpush1.msra.mxu0 0.0
    %358 = vmatprep.subr.mxu0 0.0
    %359 = vmatpush1.msra.mxu0 0.0
    %360 = vmatprep.subr.mxu0 0.0
    %361 = vmatpush1.msra.mxu0 0.0
    %362 = vmatprep.subr.mxu0 0.0
    %363 = vmatpush1.msra.mxu0 0.0
    %364 = vmatprep.subr.mxu0 0.0
    %365 = vmatpush1.msra.mxu0 0.0
    %366 = vmatprep.subr.mxu0 0.0
    %367 = vmatpush1.msra.mxu0 0.0
    %368 = vmatprep.subr.mxu0 0.0
    %369 = vmatpush1.msra.mxu0 0.0
    %370 = vmatprep.subr.mxu0 0.0
    %371 = vmatpush1.msra.mxu0 0.0
    %372 = vmatprep.subr.mxu0 0.0
    %373 = vmatpush1.msra.mxu0 0.0
    %374 = vmatprep.subr.mxu0 0.0
    %375 = vmatpush1.msra.mxu0 0.0
    %376 = vmatprep.subr.mxu0 0.0
    %377 = vmatpush1.msra.mxu0 0.0
    %378 = vmatprep.subr.mxu0 0.0
    %379 = vmatpush1.msra.mxu0 0.0
    %380 = vmatprep.subr.mxu0 0.0
    %381 = vmatpush1.msra.mxu0 0.0
    %382 = vmatprep.subr.mxu0 0.0
    %383 = vmatpush1.msra.mxu0 0.0
    %384 = vmatprep.subr.mxu0 0.0
    %385 = vmatpush1.msra.mxu0 0.0
    %386 = vmatprep.subr.mxu0 0.0
    %387 = vmatpush1.msra.mxu0 0.0
    %388 = vmatprep.subr.mxu0 0.0
    %389 = vmatpush1.msra.mxu0 0.0
    %390 = vmatprep.subr.mxu0 0.0
    %391 = vmatpush1.msra.mxu0 0.0
    %392 = vmatprep.subr.mxu0 0.0
    %393 = vmatpush1.msra.mxu0 0.0
    %394 = vmatprep.mubr.f32.mxu0 0.0
    %395 = vmatmul.mubr.f32.gmra.mrb[0].mxu0 %v82
    %v396 = vpop.f32.mrb[0].mxu0
    %v397 = vadd.f32 %v68, %v396
    %v398 = vpop.f32.mrb[0].mxu0
    %399 = vmatprep.mubr.f32.mxu0 0.0
    %400 = vmatmul.mubr.f32.gmra.mrb[0].mxu0 %v85
    %v401 = vpop.f32.mrb[0].mxu0
    %v402 = vadd.f32 %v73, %v401
    %v403 = vpop.f32.mrb[0].mxu0
    %404 = vmatprep.mubr.f32.mxu0 0.0
    %405 = vmatmul.mubr.f32.gmra.mrb[0].mxu0 %v88
    %v406 = vpop.f32.mrb[0].mxu0
    %v407 = vadd.f32 %v78, %v406
    %v408 = vpop.f32.mrb[0].mxu0
    %409 = vdwg.mxu0
    %410 = vmatprep.subr.mxu0 0.0
    %411 = vmatpush1.msra.mxu0 %v47
    %412 = vmatprep.subr.mxu0 0.0
    %413 = vmatpush1.msra.mxu0 0.0
    %414 = vmatprep.subr.mxu0 0.0
    %415 = vmatpush1.msra.mxu0 0.0
    %416 = vmatprep.subr.mxu0 0.0
    %417 = vmatpush1.msra.mxu0 0.0
    %418 = vmatprep.subr.mxu0 0.0
    %419 = vmatpush1.msra.mxu0 0.0
    %420 = vmatprep.subr.mxu0 0.0
    %421 = vmatpush1.msra.mxu0 0.0
    %422 = vmatprep.subr.mxu0 0.0
    %423 = vmatpush1.msra.mxu0 0.0
    %424 = vmatprep.subr.mxu0 0.0
    %425 = vmatpush1.msra.mxu0 0.0
    %426 = vmatprep.subr.mxu0 0.0
    %427 = vmatpush1.msra.mxu0 0.0
    %428 = vmatprep.subr.mxu0 0.0
    %429 = vmatpush1.msra.mxu0 0.0
    %430 = vmatprep.subr.mxu0 0.0
    %431 = vmatpush1.msra.mxu0 0.0
    %432 = vmatprep.subr.mxu0 0.0
    %433 = vmatpush1.msra.mxu0 0.0
    %434 = vmatprep.subr.mxu0 0.0
    %435 = vmatpush1.msra.mxu0 0.0
    %436 = vmatprep.subr.mxu0 0.0
    %437 = vmatpush1.msra.mxu0 0.0
    %438 = vmatprep.subr.mxu0 0.0
    %439 = vmatpush1.msra.mxu0 0.0
    %440 = vmatprep.subr.mxu0 0.0
    %441 = vmatpush1.msra.mxu0 0.0
    %442 = vmatprep.subr.mxu0 0.0
    %443 = vmatpush1.msra.mxu0 0.0
    %444 = vmatprep.subr.mxu0 0.0
    %445 = vmatpush1.msra.mxu0 0.0
    %446 = vmatprep.subr.mxu0 0.0
    %447 = vmatpush1.msra.mxu0 0.0
    %448 = vmatprep.subr.mxu0 0.0
    %449 = vmatpush1.msra.mxu0 0.0
    %450 = vmatprep.subr.mxu0 0.0
    %451 = vmatpush1.msra.mxu0 0.0
    %452 = vmatprep.subr.mxu0 0.0
    %453 = vmatpush1.msra.mxu0 0.0
    %454 = vmatprep.subr.mxu0 0.0
    %455 = vmatpush1.msra.mxu0 0.0
    %456 = vmatprep.subr.mxu0 0.0
    %457 = vmatpush1.msra.mxu0 0.0
    %458 = vmatprep.subr.mxu0 0.0
    %459 = vmatpush1.msra.mxu0 0.0
    %460 = vmatprep.subr.mxu0 0.0
    %461 = vmatpush1.msra.mxu0 0.0
    %462 = vmatprep.subr.mxu0 0.0
    %463 = vmatpush1.msra.mxu0 0.0
    %464 = vmatprep.subr.mxu0 0.0
    %465 = vmatpush1.msra.mxu0 0.0
    %466 = vmatprep.subr.mxu0 0.0
    %467 = vmatpush1.msra.mxu0 0.0
    %468 = vmatprep.subr.mxu0 0.0
    %469 = vmatpush1.msra.mxu0 0.0
    %470 = vmatprep.subr.mxu0 0.0
    %471 = vmatpush1.msra.mxu0 0.0
    %472 = vmatprep.subr.mxu0 0.0
    %473 = vmatpush1.msra.mxu0 0.0
    %474 = vmatprep.mubr.f32.mxu0 0.0
    %475 = vmatmul.mubr.f32.gmra.mrb[0].mxu0 %v82
    %v476 = vpop.f32.mrb[0].mxu0
    %v477 = vadd.f32 %v68, %v476
    %v478 = vpop.f32.mrb[0].mxu0
    %479 = vmatprep.mubr.f32.mxu0 0.0
    %480 = vmatmul.mubr.f32.gmra.mrb[0].mxu0 %v85
    %v481 = vpop.f32.mrb[0].mxu0
    %v482 = vadd.f32 %v73, %v481
    %v483 = vpop.f32.mrb[0].mxu0
    %484 = vmatprep.mubr.f32.mxu0 0.0
    %485 = vmatmul.mubr.f32.gmra.mrb[0].mxu0 %v88
    %v486 = vpop.f32.mrb[0].mxu0
    %v487 = vadd.f32 %v78, %v486
    %v488 = vpop.f32.mrb[0].mxu0
    %489 = vdwg.mxu0
    %490 = vmatprep.subr.mxu0 0.0
    %491 = vmatpush1.msra.mxu0 %v48
    %492 = vmatprep.subr.mxu0 0.0
    %493 = vmatpush1.msra.mxu0 0.0
    %494 = vmatprep.subr.mxu0 0.0
    %495 = vmatpush1.msra.mxu0 0.0
    %496 = vmatprep.subr.mxu0 0.0
    %497 = vmatpush1.msra.mxu0 0.0
    %498 = vmatprep.subr.mxu0 0.0
    %499 = vmatpush1.msra.mxu0 0.0
    %500 = vmatprep.subr.mxu0 0.0
    %501 = vmatpush1.msra.mxu0 0.0
    %502 = vmatprep.subr.mxu0 0.0
    %503 = vmatpush1.msra.mxu0 0.0
    %504 = vmatprep.subr.mxu0 0.0
    %505 = vmatpush1.msra.mxu0 0.0
    %506 = vmatprep.subr.mxu0 0.0
    %507 = vmatpush1.msra.mxu0 0.0
    %508 = vmatprep.subr.mxu0 0.0
    %509 = vmatpush1.msra.mxu0 0.0
    %510 = vmatprep.subr.mxu0 0.0
    %511 = vmatpush1.msra.mxu0 0.0
    %512 = vmatprep.subr.mxu0 0.0
    %513 = vmatpush1.msra.mxu0 0.0
    %514 = vmatprep.subr.mxu0 0.0
    %515 = vmatpush1.msra.mxu0 0.0
    %516 = vmatprep.subr.mxu0 0.0
    %517 = vmatpush1.msra.mxu0 0.0
    %518 = vmatprep.subr.mxu0 0.0
    %519 = vmatpush1.msra.mxu0 0.0
    %520 = vmatprep.subr.mxu0 0.0
    %521 = vmatpush1.msra.mxu0 0.0
    %522 = vmatprep.subr.mxu0 0.0
    %523 = vmatpush1.msra.mxu0 0.0
    %524 = vmatprep.subr.mxu0 0.0
    %525 = vmatpush1.msra.mxu0 0.0
    %526 = vmatprep.subr.mxu0 0.0
    %527 = vmatpush1.msra.mxu0 0.0
    %528 = vmatprep.subr.mxu0 0.0
    %529 = vmatpush1.msra.mxu0 0.0
    %530 = vmatprep.subr.mxu0 0.0
    %531 = vmatpush1.msra.mxu0 0.0
    %532 = vmatprep.subr.mxu0 0.0
    %533 = vmatpush1.msra.mxu0 0.0
    %534 = vmatprep.subr.mxu0 0.0
    %535 = vmatpush1.msra.mxu0 0.0
    %536 = vmatprep.subr.mxu0 0.0
    %537 = vmatpush1.msra.mxu0 0.0
    %538 = vmatprep.subr.mxu0 0.0
    %539 = vmatpush1.msra.mxu0 0.0
    %540 = vmatprep.subr.mxu0 0.0
    %541 = vmatpush1.msra.mxu0 0.0
    %542 = vmatprep.subr.mxu0 0.0
    %543 = vmatpush1.msra.mxu0 0.0
    %544 = vmatprep.subr.mxu0 0.0
    %545 = vmatpush1.msra.mxu0 0.0
    %546 = vmatprep.subr.mxu0 0.0
    %547 = vmatpush1.msra.mxu0 0.0
    %548 = vmatprep.subr.mxu0 0.0
    %549 = vmatpush1.msra.mxu0 0.0
    %550 = vmatprep.subr.mxu0 0.0
    %551 = vmatpush1.msra.mxu0 0.0
    %552 = vmatprep.subr.mxu0 0.0
    %553 = vmatpush1.msra.mxu0 0.0
    %554 = vmatprep.mubr.f32.mxu0 0.0
    %555 = vmatmul.mubr.f32.gmra.mrb[0].mxu0 %v82
    %v556 = vpop.f32.mrb[0].mxu0
    %v557 = vadd.f32 %v68, %v556
    %v558 = vpop.f32.mrb[0].mxu0
    %559 = vmatprep.mubr.f32.mxu0 0.0
    %560 = vmatmul.mubr.f32.gmra.mrb[0].mxu0 %v85
    %v561 = vpop.f32.mrb[0].mxu0
    %v562 = vadd.f32 %v73, %v561
    %v563 = vpop.f32.mrb[0].mxu0
    %564 = vmatprep.mubr.f32.mxu0 0.0
    %565 = vmatmul.mubr.f32.gmra.mrb[0].mxu0 %v88
    %v566 = vpop.f32.mrb[0].mxu0
    %v567 = vadd.f32 %v78, %v566
    %v568 = vpop.f32.mrb[0].mxu0
    %569 = vdwg.mxu0
    %570 = vmatprep.subr.mxu0 0.0
    %571 = vmatpush1.msra.mxu0 %v49
    %572 = vmatprep.subr.mxu0 0.0
    %573 = vmatpush1.msra.mxu0 0.0
    %574 = vmatprep.subr.mxu0 0.0
    %575 = vmatpush1.msra.mxu0 0.0
    %576 = vmatprep.subr.mxu0 0.0
    %577 = vmatpush1.msra.mxu0 0.0
    %578 = vmatprep.subr.mxu0 0.0
    %579 = vmatpush1.msra.mxu0 0.0
    %580 = vmatprep.subr.mxu0 0.0
    %581 = vmatpush1.msra.mxu0 0.0
    %582 = vmatprep.subr.mxu0 0.0
    %583 = vmatpush1.msra.mxu0 0.0
    %584 = vmatprep.subr.mxu0 0.0
    %585 = vmatpush1.msra.mxu0 0.0
    %586 = vmatprep.subr.mxu0 0.0
    %587 = vmatpush1.msra.mxu0 0.0
    %588 = vmatprep.subr.mxu0 0.0
    %589 = vmatpush1.msra.mxu0 0.0
    %590 = vmatprep.subr.mxu0 0.0
    %591 = vmatpush1.msra.mxu0 0.0
    %592 = vmatprep.subr.mxu0 0.0
    %593 = vmatpush1.msra.mxu0 0.0
    %594 = vmatprep.subr.mxu0 0.0
    %595 = vmatpush1.msra.mxu0 0.0
    %596 = vmatprep.subr.mxu0 0.0
    %597 = vmatpush1.msra.mxu0 0.0
    %598 = vmatprep.subr.mxu0 0.0
    %599 = vmatpush1.msra.mxu0 0.0
    %600 = vmatprep.subr.mxu0 0.0
    %601 = vmatpush1.msra.mxu0 0.0
    %602 = vmatprep.subr.mxu0 0.0
    %603 = vmatpush1.msra.mxu0 0.0
    %604 = vmatprep.subr.mxu0 0.0
    %605 = vmatpush1.msra.mxu0 0.0
    %606 = vmatprep.subr.mxu0 0.0
    %607 = vmatpush1.msra.mxu0 0.0
    %608 = vmatprep.subr.mxu0 0.0
    %609 = vmatpush1.msra.mxu0 0.0
    %610 = vmatprep.subr.mxu0 0.0
    %611 = vmatpush1.msra.mxu0 0.0
    %612 = vmatprep.subr.mxu0 0.0
    %613 = vmatpush1.msra.mxu0 0.0
    %614 = vmatprep.subr.mxu0 0.0
    %615 = vmatpush1.msra.mxu0 0.0
    %616 = vmatprep.subr.mxu0 0.0
    %617 = vmatpush1.msra.mxu0 0.0
    %618 = vmatprep.subr.mxu0 0.0
    %619 = vmatpush1.msra.mxu0 0.0
    %620 = vmatprep.subr.mxu0 0.0
    %621 = vmatpush1.msra.mxu0 0.0
    %622 = vmatprep.subr.mxu0 0.0
    %623 = vmatpush1.msra.mxu0 0.0
    %624 = vmatprep.subr.mxu0 0.0
    %625 = vmatpush1.msra.mxu0 0.0
    %626 = vmatprep.subr.mxu0 0.0
    %627 = vmatpush1.msra.mxu0 0.0
    %628 = vmatprep.subr.mxu0 0.0
    %629 = vmatpush1.msra.mxu0 0.0
    %630 = vmatprep.subr.mxu0 0.0
    %631 = vmatpush1.msra.mxu0 0.0
    %632 = vmatprep.subr.mxu0 0.0
    %633 = vmatpush1.msra.mxu0 0.0
    %634 = vmatprep.mubr.f32.mxu0 0.0
    %635 = vmatmul.mubr.f32.gmra.mrb[0].mxu0 %v82
    %v636 = vpop.f32.mrb[0].mxu0
    %v637 = vadd.f32 %v68, %v636
    %v638 = vpop.f32.mrb[0].mxu0
    %639 = vmatprep.mubr.f32.mxu0 0.0
    %640 = vmatmul.mubr.f32.gmra.mrb[0].mxu0 %v85
    %v641 = vpop.f32.mrb[0].mxu0
    %v642 = vadd.f32 %v73, %v641
    %v643 = vpop.f32.mrb[0].mxu0
    %644 = vmatprep.mubr.f32.mxu0 0.0
    %645 = vmatmul.mubr.f32.gmra.mrb[0].mxu0 %v88
    %v646 = vpop.f32.mrb[0].mxu0
    %v647 = vadd.f32 %v78, %v646
    %v648 = vpop.f32.mrb[0].mxu0
    %649 = vdwg.mxu0
    %650 = vmatprep.subr.mxu0 0.0
    %651 = vmatpush1.msra.mxu0 %v50
    %652 = vmatprep.subr.mxu0 0.0
    %653 = vmatpush1.msra.mxu0 0.0
    %654 = vmatprep.subr.mxu0 0.0
    %655 = vmatpush1.msra.mxu0 0.0
    %656 = vmatprep.subr.mxu0 0.0
    %657 = vmatpush1.msra.mxu0 0.0
    %658 = vmatprep.subr.mxu0 0.0
    %659 = vmatpush1.msra.mxu0 0.0
    %660 = vmatprep.subr.mxu0 0.0
    %661 = vmatpush1.msra.mxu0 0.0
    %662 = vmatprep.subr.mxu0 0.0
    %663 = vmatpush1.msra.mxu0 0.0
    %664 = vmatprep.subr.mxu0 0.0
    %665 = vmatpush1.msra.mxu0 0.0
    %666 = vmatprep.subr.mxu0 0.0
    %667 = vmatpush1.msra.mxu0 0.0
    %668 = vmatprep.subr.mxu0 0.0
    %669 = vmatpush1.msra.mxu0 0.0
    %670 = vmatprep.subr.mxu0 0.0
    %671 = vmatpush1.msra.mxu0 0.0
    %672 = vmatprep.subr.mxu0 0.0
    %673 = vmatpush1.msra.mxu0 0.0
    %674 = vmatprep.subr.mxu0 0.0
    %675 = vmatpush1.msra.mxu0 0.0
    %676 = vmatprep.subr.mxu0 0.0
    %677 = vmatpush1.msra.mxu0 0.0
    %678 = vmatprep.subr.mxu0 0.0
    %679 = vmatpush1.msra.mxu0 0.0
    %680 = vmatprep.subr.mxu0 0.0
    %681 = vmatpush1.msra.mxu0 0.0
    %682 = vmatprep.subr.mxu0 0.0
    %683 = vmatpush1.msra.mxu0 0.0
    %684 = vmatprep.subr.mxu0 0.0
    %685 = vmatpush1.msra.mxu0 0.0
    %686 = vmatprep.subr.mxu0 0.0
    %687 = vmatpush1.msra.mxu0 0.0
    %688 = vmatprep.subr.mxu0 0.0
    %689 = vmatpush1.msra.mxu0 0.0
    %690 = vmatprep.subr.mxu0 0.0
    %691 = vmatpush1.msra.mxu0 0.0
    %692 = vmatprep.subr.mxu0 0.0
    %693 = vmatpush1.msra.mxu0 0.0
    %694 = vmatprep.subr.mxu0 0.0
    %695 = vmatpush1.msra.mxu0 0.0
    %696 = vmatprep.subr.mxu0 0.0
    %697 = vmatpush1.msra.mxu0 0.0
    %698 = vmatprep.subr.mxu0 0.0
    %699 = vmatpush1.msra.mxu0 0.0
    %700 = vmatprep.subr.mxu0 0.0
    %701 = vmatpush1.msra.mxu0 0.0
    %702 = vmatprep.subr.mxu0 0.0
    %703 = vmatpush1.msra.mxu0 0.0
    %704 = vmatprep.subr.mxu0 0.0
    %705 = vmatpush1.msra.mxu0 0.0
    %706 = vmatprep.subr.mxu0 0.0
    %707 = vmatpush1.msra.mxu0 0.0
    %708 = vmatprep.subr.mxu0 0.0
    %709 = vmatpush1.msra.mxu0 0.0
    %710 = vmatprep.subr.mxu0 0.0
    %711 = vmatpush1.msra.mxu0 0.0
    %712 = vmatprep.subr.mxu0 0.0
    %713 = vmatpush1.msra.mxu0 0.0
    %714 = vmatprep.mubr.f32.mxu0 0.0
    %715 = vmatmul.mubr.f32.gmra.mrb[0].mxu0 %v82
    %v716 = vpop.f32.mrb[0].mxu0
    %v717 = vadd.f32 %v68, %v716
    %v718 = vpop.f32.mrb[0].mxu0
    %719 = vmatprep.mubr.f32.mxu0 0.0
    %720 = vmatmul.mubr.f32.gmra.mrb[0].mxu0 %v85
    %v721 = vpop.f32.mrb[0].mxu0
    %v722 = vadd.f32 %v73, %v721
    %v723 = vpop.f32.mrb[0].mxu0
    %724 = vmatprep.mubr.f32.mxu0 0.0
    %725 = vmatmul.mubr.f32.gmra.mrb[0].mxu0 %v88
    %v726 = vpop.f32.mrb[0].mxu0
    %v727 = vadd.f32 %v78, %v726
    %v728 = vpop.f32.mrb[0].mxu0
    %729 = vdwg.mxu0
    %730 = vmatprep.subr.mxu0 0.0
    %731 = vmatpush1.msra.mxu0 %v51
    %732 = vmatprep.subr.mxu0 0.0
    %733 = vmatpush1.msra.mxu0 0.0
    %734 = vmatprep.subr.mxu0 0.0
    %735 = vmatpush1.msra.mxu0 0.0
    %736 = vmatprep.subr.mxu0 0.0
    %737 = vmatpush1.msra.mxu0 0.0
    %738 = vmatprep.subr.mxu0 0.0
    %739 = vmatpush1.msra.mxu0 0.0
    %740 = vmatprep.subr.mxu0 0.0
    %741 = vmatpush1.msra.mxu0 0.0
    %742 = vmatprep.subr.mxu0 0.0
    %743 = vmatpush1.msra.mxu0 0.0
    %744 = vmatprep.subr.mxu0 0.0
    %745 = vmatpush1.msra.mxu0 0.0
    %746 = vmatprep.subr.mxu0 0.0
    %747 = vmatpush1.msra.mxu0 0.0
    %748 = vmatprep.subr.mxu0 0.0
    %749 = vmatpush1.msra.mxu0 0.0
    %750 = vmatprep.subr.mxu0 0.0
    %751 = vmatpush1.msra.mxu0 0.0
    %752 = vmatprep.subr.mxu0 0.0
    %753 = vmatpush1.msra.mxu0 0.0
    %754 = vmatprep.subr.mxu0 0.0
    %755 = vmatpush1.msra.mxu0 0.0
    %756 = vmatprep.subr.mxu0 0.0
    %757 = vmatpush1.msra.mxu0 0.0
    %758 = vmatprep.subr.mxu0 0.0
    %759 = vmatpush1.msra.mxu0 0.0
    %760 = vmatprep.subr.mxu0 0.0
    %761 = vmatpush1.msra.mxu0 0.0
    %762 = vmatprep.subr.mxu0 0.0
    %763 = vmatpush1.msra.mxu0 0.0
    %764 = vmatprep.subr.mxu0 0.0
    %765 = vmatpush1.msra.mxu0 0.0
    %766 = vmatprep.subr.mxu0 0.0
    %767 = vmatpush1.msra.mxu0 0.0
    %768 = vmatprep.subr.mxu0 0.0
    %769 = vmatpush1.msra.mxu0 0.0
    %770 = vmatprep.subr.mxu0 0.0
    %771 = vmatpush1.msra.mxu0 0.0
    %772 = vmatprep.subr.mxu0 0.0
    %773 = vmatpush1.msra.mxu0 0.0
    %774 = vmatprep.subr.mxu0 0.0
    %775 = vmatpush1.msra.mxu0 0.0
    %776 = vmatprep.subr.mxu0 0.0
    %777 = vmatpush1.msra.mxu0 0.0
    %778 = vmatprep.subr.mxu0 0.0
    %779 = vmatpush1.msra.mxu0 0.0
    %780 = vmatprep.subr.mxu0 0.0
    %781 = vmatpush1.msra.mxu0 0.0
    %782 = vmatprep.subr.mxu0 0.0
    %783 = vmatpush1.msra.mxu0 0.0
    %784 = vmatprep.subr.mxu0 0.0
    %785 = vmatpush1.msra.mxu0 0.0
    %786 = vmatprep.subr.mxu0 0.0
    %787 = vmatpush1.msra.mxu0 0.0
    %788 = vmatprep.subr.mxu0 0.0
    %789 = vmatpush1.msra.mxu0 0.0
    %790 = vmatprep.subr.mxu0 0.0
    %791 = vmatpush1.msra.mxu0 0.0
    %792 = vmatprep.subr.mxu0 0.0
    %793 = vmatpush1.msra.mxu0 0.0
    %794 = vmatprep.mubr.f32.mxu0 0.0
    %795 = vmatmul.mubr.f32.gmra.mrb[0].mxu0 %v82
    %v796 = vpop.f32.mrb[0].mxu0
    %v797 = vadd.f32 %v68, %v796
    %v798 = vpop.f32.mrb[0].mxu0
    %799 = vmatprep.mubr.f32.mxu0 0.0
    %800 = vmatmul.mubr.f32.gmra.mrb[0].mxu0 %v85
    %v801 = vpop.f32.mrb[0].mxu0
    %v802 = vadd.f32 %v73, %v801
    %v803 = vpop.f32.mrb[0].mxu0
    %804 = vmatprep.mubr.f32.mxu0 0.0
    %805 = vmatmul.mubr.f32.gmra.mrb[0].mxu0 %v88
    %v806 = vpop.f32.mrb[0].mxu0
    %v807 = vadd.f32 %v78, %v806
    %v808 = vpop.f32.mrb[0].mxu0
    %809 = vdwg.mxu0
    %810 = vmatprep.subr.mxu0 0.0
    %811 = vmatpush1.msra.mxu0 %v52
    %812 = vmatprep.subr.mxu0 0.0
    %813 = vmatpush1.msra.mxu0 0.0
    %814 = vmatprep.subr.mxu0 0.0
    %815 = vmatpush1.msra.mxu0 0.0
    %816 = vmatprep.subr.mxu0 0.0
    %817 = vmatpush1.msra.mxu0 0.0
    %818 = vmatprep.subr.mxu0 0.0
    %819 = vmatpush1.msra.mxu0 0.0
    %820 = vmatprep.subr.mxu0 0.0
    %821 = vmatpush1.msra.mxu0 0.0
    %822 = vmatprep.subr.mxu0 0.0
    %823 = vmatpush1.msra.mxu0 0.0
    %824 = vmatprep.subr.mxu0 0.0
    %825 = vmatpush1.msra.mxu0 0.0
    %826 = vmatprep.subr.mxu0 0.0
    %827 = vmatpush1.msra.mxu0 0.0
    %828 = vmatprep.subr.mxu0 0.0
    %829 = vmatpush1.msra.mxu0 0.0
    %830 = vmatprep.subr.mxu0 0.0
    %831 = vmatpush1.msra.mxu0 0.0
    %832 = vmatprep.subr.mxu0 0.0
    %833 = vmatpush1.msra.mxu0 0.0
    %834 = vmatprep.subr.mxu0 0.0
    %835 = vmatpush1.msra.mxu0 0.0
    %836 = vmatprep.subr.mxu0 0.0
    %837 = vmatpush1.msra.mxu0 0.0
    %838 = vmatprep.subr.mxu0 0.0
    %839 = vmatpush1.msra.mxu0 0.0
    %840 = vmatprep.subr.mxu0 0.0
    %841 = vmatpush1.msra.mxu0 0.0
    %842 = vmatprep.subr.mxu0 0.0
    %843 = vmatpush1.msra.mxu0 0.0
    %844 = vmatprep.subr.mxu0 0.0
    %845 = vmatpush1.msra.mxu0 0.0
    %846 = vmatprep.subr.mxu0 0.0
    %847 = vmatpush1.msra.mxu0 0.0
    %848 = vmatprep.subr.mxu0 0.0
    %849 = vmatpush1.msra.mxu0 0.0
    %850 = vmatprep.subr.mxu0 0.0
    %851 = vmatpush1.msra.mxu0 0.0
    %852 = vmatprep.subr.mxu0 0.0
    %853 = vmatpush1.msra.mxu0 0.0
    %854 = vmatprep.subr.mxu0 0.0
    %855 = vmatpush1.msra.mxu0 0.0
    %856 = vmatprep.subr.mxu0 0.0
    %857 = vmatpush1.msra.mxu0 0.0
    %858 = vmatprep.subr.mxu0 0.0
    %859 = vmatpush1.msra.mxu0 0.0
    %860 = vmatprep.subr.mxu0 0.0
    %861 = vmatpush1.msra.mxu0 0.0
    %862 = vmatprep.subr.mxu0 0.0
    %863 = vmatpush1.msra.mxu0 0.0
    %864 = vmatprep.subr.mxu0 0.0
    %865 = vmatpush1.msra.mxu0 0.0
    %866 = vmatprep.subr.mxu0 0.0
    %867 = vmatpush1.msra.mxu0 0.0
    %868 = vmatprep.subr.mxu0 0.0
    %869 = vmatpush1.msra.mxu0 0.0
    %870 = vmatprep.subr.mxu0 0.0
    %871 = vmatpush1.msra.mxu0 0.0
    %872 = vmatprep.subr.mxu0 0.0
    %873 = vmatpush1.msra.mxu0 0.0
    %874 = vmatprep.mubr.f32.mxu0 0.0
    %875 = vmatmul.mubr.f32.gmra.mrb[0].mxu0 %v82
    %v876 = vpop.f32.mrb[0].mxu0
    %v877 = vadd.f32 %v68, %v876
    %v878 = vpop.f32.mrb[0].mxu0
    %879 = vmatprep.mubr.f32.mxu0 0.0
    %880 = vmatmul.mubr.f32.gmra.mrb[0].mxu0 %v85
    %v881 = vpop.f32.mrb[0].mxu0
    %v882 = vadd.f32 %v73, %v881
    %v883 = vpop.f32.mrb[0].mxu0
    %884 = vmatprep.mubr.f32.mxu0 0.0
    %885 = vmatmul.mubr.f32.gmra.mrb[0].mxu0 %v88
    %v886 = vpop.f32.mrb[0].mxu0
    %v887 = vadd.f32 %v78, %v886
    %v888 = vpop.f32.mrb[0].mxu0
    %889 = vdwg.mxu0
    %890 = vmatprep.subr.mxu0 0.0
    %891 = vmatpush1.msra.mxu0 %v53
    %892 = vmatprep.subr.mxu0 0.0
    %893 = vmatpush1.msra.mxu0 0.0
    %894 = vmatprep.subr.mxu0 0.0
    %895 = vmatpush1.msra.mxu0 0.0
    %896 = vmatprep.subr.mxu0 0.0
    %897 = vmatpush1.msra.mxu0 0.0
    %898 = vmatprep.subr.mxu0 0.0
    %899 = vmatpush1.msra.mxu0 0.0
    %900 = vmatprep.subr.mxu0 0.0
    %901 = vmatpush1.msra.mxu0 0.0
    %902 = vmatprep.subr.mxu0 0.0
    %903 = vmatpush1.msra.mxu0 0.0
    %904 = vmatprep.subr.mxu0 0.0
    %905 = vmatpush1.msra.mxu0 0.0
    %906 = vmatprep.subr.mxu0 0.0
    %907 = vmatpush1.msra.mxu0 0.0
    %908 = vmatprep.subr.mxu0 0.0
    %909 = vmatpush1.msra.mxu0 0.0
    %910 = vmatprep.subr.mxu0 0.0
    %911 = vmatpush1.msra.mxu0 0.0
    %912 = vmatprep.subr.mxu0 0.0
    %913 = vmatpush1.msra.mxu0 0.0
    %914 = vmatprep.subr.mxu0 0.0
    %915 = vmatpush1.msra.mxu0 0.0
    %916 = vmatprep.subr.mxu0 0.0
    %917 = vmatpush1.msra.mxu0 0.0
    %918 = vmatprep.subr.mxu0 0.0
    %919 = vmatpush1.msra.mxu0 0.0
    %920 = vmatprep.subr.mxu0 0.0
    %921 = vmatpush1.msra.mxu0 0.0
    %922 = vmatprep.subr.mxu0 0.0
    %923 = vmatpush1.msra.mxu0 0.0
    %924 = vmatprep.subr.mxu0 0.0
    %925 = vmatpush1.msra.mxu0 0.0
    %926 = vmatprep.subr.mxu0 0.0
    %927 = vmatpush1.msra.mxu0 0.0
    %928 = vmatprep.subr.mxu0 0.0
    %929 = vmatpush1.msra.mxu0 0.0
    %930 = vmatprep.subr.mxu0 0.0
    %931 = vmatpush1.msra.mxu0 0.0
    %932 = vmatprep.subr.mxu0 0.0
    %933 = vmatpush1.msra.mxu0 0.0
    %934 = vmatprep.subr.mxu0 0.0
    %935 = vmatpush1.msra.mxu0 0.0
    %936 = vmatprep.subr.mxu0 0.0
    %937 = vmatpush1.msra.mxu0 0.0
    %938 = vmatprep.subr.mxu0 0.0
    %939 = vmatpush1.msra.mxu0 0.0
    %940 = vmatprep.subr.mxu0 0.0
    %941 = vmatpush1.msra.mxu0 0.0
    %942 = vmatprep.subr.mxu0 0.0
    %943 = vmatpush1.msra.mxu0 0.0
    %944 = vmatprep.subr.mxu0 0.0
    %945 = vmatpush1.msra.mxu0 0.0
    %946 = vmatprep.subr.mxu0 0.0
    %947 = vmatpush1.msra.mxu0 0.0
    %948 = vmatprep.subr.mxu0 0.0
    %949 = vmatpush1.msra.mxu0 0.0
    %950 = vmatprep.subr.mxu0 0.0
    %951 = vmatpush1.msra.mxu0 0.0
    %952 = vmatprep.subr.mxu0 0.0
    %953 = vmatpush1.msra.mxu0 0.0
    %954 = vmatprep.mubr.f32.mxu0 0.0
    %955 = vmatmul.mubr.f32.gmra.mrb[0].mxu0 %v82
    %v956 = vpop.f32.mrb[0].mxu0
    %v957 = vadd.f32 %v68, %v956
    %v958 = vpop.f32.mrb[0].mxu0
    %959 = vmatprep.mubr.f32.mxu0 0.0
    %960 = vmatmul.mubr.f32.gmra.mrb[0].mxu0 %v85
    %v961 = vpop.f32.mrb[0].mxu0
    %v962 = vadd.f32 %v73, %v961
    %v963 = vpop.f32.mrb[0].mxu0
    %964 = vmatprep.mubr.f32.mxu0 0.0
    %965 = vmatmul.mubr.f32.gmra.mrb[0].mxu0 %v88
    %v966 = vpop.f32.mrb[0].mxu0
    %v967 = vadd.f32 %v78, %v966
    %v968 = vpop.f32.mrb[0].mxu0
    %969 = vdwg.mxu0
    %970 = vmatprep.subr.mxu0 0.0
    %971 = vmatpush1.msra.mxu0 %v54
    %972 = vmatprep.subr.mxu0 0.0
    %973 = vmatpush1.msra.mxu0 0.0
    %974 = vmatprep.subr.mxu0 0.0
    %975 = vmatpush1.msra.mxu0 0.0
    %976 = vmatprep.subr.mxu0 0.0
    %977 = vmatpush1.msra.mxu0 0.0
    %978 = vmatprep.subr.mxu0 0.0
    %979 = vmatpush1.msra.mxu0 0.0
    %980 = vmatprep.subr.mxu0 0.0
    %981 = vmatpush1.msra.mxu0 0.0
    %982 = vmatprep.subr.mxu0 0.0
    %983 = vmatpush1.msra.mxu0 0.0
    %984 = vmatprep.subr.mxu0 0.0
    %985 = vmatpush1.msra.mxu0 0.0
    %986 = vmatprep.subr.mxu0 0.0
    %987 = vmatpush1.msra.mxu0 0.0
    %988 = vmatprep.subr.mxu0 0.0
    %989 = vmatpush1.msra.mxu0 0.0
    %990 = vmatprep.subr.mxu0 0.0
    %991 = vmatpush1.msra.mxu0 0.0
    %992 = vmatprep.subr.mxu0 0.0
    %993 = vmatpush1.msra.mxu0 0.0
    %994 = vmatprep.subr.mxu0 0.0
    %995 = vmatpush1.msra.mxu0 0.0
    %996 = vmatprep.subr.mxu0 0.0
    %997 = vmatpush1.msra.mxu0 0.0
    %998 = vmatprep.subr.mxu0 0.0
    %999 = vmatpush1.msra.mxu0 0.0
    %1000 = vmatprep.subr.mxu0 0.0
    %1001 = vmatpush1.msra.mxu0 0.0
    %1002 = vmatprep.subr.mxu0 0.0
    %1003 = vmatpush1.msra.mxu0 0.0
    %1004 = vmatprep.subr.mxu0 0.0
    %1005 = vmatpush1.msra.mxu0 0.0
    %1006 = vmatprep.subr.mxu0 0.0
    %1007 = vmatpush1.msra.mxu0 0.0
    %1008 = vmatprep.subr.mxu0 0.0
    %1009 = vmatpush1.msra.mxu0 0.0
    %1010 = vmatprep.subr.mxu0 0.0
    %1011 = vmatpush1.msra.mxu0 0.0
    %1012 = vmatprep.subr.mxu0 0.0
    %1013 = vmatpush1.msra.mxu0 0.0
    %1014 = vmatprep.subr.mxu0 0.0
    %1015 = vmatpush1.msra.mxu0 0.0
    %1016 = vmatprep.subr.mxu0 0.0
    %1017 = vmatpush1.msra.mxu0 0.0
    %1018 = vmatprep.subr.mxu0 0.0
    %1019 = vmatpush1.msra.mxu0 0.0
    %1020 = vmatprep.subr.mxu0 0.0
    %1021 = vmatpush1.msra.mxu0 0.0
    %1022 = vmatprep.subr.mxu0 0.0
    %1023 = vmatpush1.msra.mxu0 0.0
    %1024 = vmatprep.subr.mxu0 0.0
    %1025 = vmatpush1.msra.mxu0 0.0
    %1026 = vmatprep.subr.mxu0 0.0
    %1027 = vmatpush1.msra.mxu0 0.0
    %1028 = vmatprep.subr.mxu0 0.0
    %1029 = vmatpush1.msra.mxu0 0.0
    %1030 = vmatprep.subr.mxu0 0.0
    %1031 = vmatpush1.msra.mxu0 0.0
    %1032 = vmatprep.subr.mxu0 0.0
    %1033 = vmatpush1.msra.mxu0 0.0
    %1034 = vmatprep.mubr.f32.mxu0 0.0
    %1035 = vmatmul.mubr.f32.gmra.mrb[0].mxu0 %v82
    %v1036 = vpop.f32.mrb[0].mxu0
    %v1037 = vadd.f32 %v68, %v1036
    %v1038 = vpop.f32.mrb[0].mxu0
    %1039 = vmatprep.mubr.f32.mxu0 0.0
    %1040 = vmatmul.mubr.f32.gmra.mrb[0].mxu0 %v85
    %v1041 = vpop.f32.mrb[0].mxu0
    %v1042 = vadd.f32 %v73, %v1041
    %v1043 = vpop.f32.mrb[0].mxu0
    %1044 = vmatprep.mubr.f32.mxu0 0.0
    %1045 = vmatmul.mubr.f32.gmra.mrb[0].mxu0 %v88
    %v1046 = vpop.f32.mrb[0].mxu0
    %v1047 = vadd.f32 %v78, %v1046
    %v1048 = vpop.f32.mrb[0].mxu0
    %1049 = vdwg.mxu0
    %1050 = vmatprep.subr.mxu0 0.0
    %1051 = vmatpush1.msra.mxu0 %v55
    %1052 = vmatprep.subr.mxu0 0.0
    %1053 = vmatpush1.msra.mxu0 0.0
    %1054 = vmatprep.subr.mxu0 0.0
    %1055 = vmatpush1.msra.mxu0 0.0
    %1056 = vmatprep.subr.mxu0 0.0
    %1057 = vmatpush1.msra.mxu0 0.0
    %1058 = vmatprep.subr.mxu0 0.0
    %1059 = vmatpush1.msra.mxu0 0.0
    %1060 = vmatprep.subr.mxu0 0.0
    %1061 = vmatpush1.msra.mxu0 0.0
    %1062 = vmatprep.subr.mxu0 0.0
    %1063 = vmatpush1.msra.mxu0 0.0
    %1064 = vmatprep.subr.mxu0 0.0
    %1065 = vmatpush1.msra.mxu0 0.0
    %1066 = vmatprep.subr.mxu0 0.0
    %1067 = vmatpush1.msra.mxu0 0.0
    %1068 = vmatprep.subr.mxu0 0.0
    %1069 = vmatpush1.msra.mxu0 0.0
    %1070 = vmatprep.subr.mxu0 0.0
    %1071 = vmatpush1.msra.mxu0 0.0
    %1072 = vmatprep.subr.mxu0 0.0
    %1073 = vmatpush1.msra.mxu0 0.0
    %1074 = vmatprep.subr.mxu0 0.0
    %1075 = vmatpush1.msra.mxu0 0.0
    %1076 = vmatprep.subr.mxu0 0.0
    %1077 = vmatpush1.msra.mxu0 0.0
    %1078 = vmatprep.subr.mxu0 0.0
    %1079 = vmatpush1.msra.mxu0 0.0
    %1080 = vmatprep.subr.mxu0 0.0
    %1081 = vmatpush1.msra.mxu0 0.0
    %1082 = vmatprep.subr.mxu0 0.0
    %1083 = vmatpush1.msra.mxu0 0.0
    %1084 = vmatprep.subr.mxu0 0.0
    %1085 = vmatpush1.msra.mxu0 0.0
    %1086 = vmatprep.subr.mxu0 0.0
    %1087 = vmatpush1.msra.mxu0 0.0
    %1088 = vmatprep.subr.mxu0 0.0
    %1089 = vmatpush1.msra.mxu0 0.0
    %1090 = vmatprep.subr.mxu0 0.0
    %1091 = vmatpush1.msra.mxu0 0.0
    %1092 = vmatprep.subr.mxu0 0.0
    %1093 = vmatpush1.msra.mxu0 0.0
    %1094 = vmatprep.subr.mxu0 0.0
    %1095 = vmatpush1.msra.mxu0 0.0
    %1096 = vmatprep.subr.mxu0 0.0
    %1097 = vmatpush1.msra.mxu0 0.0
    %1098 = vmatprep.subr.mxu0 0.0
    %1099 = vmatpush1.msra.mxu0 0.0
    %1100 = vmatprep.subr.mxu0 0.0
    %1101 = vmatpush1.msra.mxu0 0.0
    %1102 = vmatprep.subr.mxu0 0.0
    %1103 = vmatpush1.msra.mxu0 0.0
    %1104 = vmatprep.subr.mxu0 0.0
    %1105 = vmatpush1.msra.mxu0 0.0
    %1106 = vmatprep.subr.mxu0 0.0
    %1107 = vmatpush1.msra.mxu0 0.0
    %1108 = vmatprep.subr.mxu0 0.0
    %1109 = vmatpush1.msra.mxu0 0.0
    %1110 = vmatprep.subr.mxu0 0.0
    %1111 = vmatpush1.msra.mxu0 0.0
    %1112 = vmatprep.subr.mxu0 0.0
    %1113 = vmatpush1.msra.mxu0 0.0
    %1114 = vmatprep.mubr.f32.mxu0 0.0
    %1115 = vmatmul.mubr.f32.gmra.mrb[0].mxu0 %v82
    %v1116 = vpop.f32.mrb[0].mxu0
    %v1117 = vadd.f32 %v68, %v1116
    %v1118 = vpop.f32.mrb[0].mxu0
    %1119 = vmatprep.mubr.f32.mxu0 0.0
    %1120 = vmatmul.mubr.f32.gmra.mrb[0].mxu0 %v85
    %v1121 = vpop.f32.mrb[0].mxu0
    %v1122 = vadd.f32 %v73, %v1121
    %v1123 = vpop.f32.mrb[0].mxu0
    %1124 = vmatprep.mubr.f32.mxu0 0.0
    %1125 = vmatmul.mubr.f32.gmra.mrb[0].mxu0 %v88
    %v1126 = vpop.f32.mrb[0].mxu0
    %v1127 = vadd.f32 %v78, %v1126
    %v1128 = vpop.f32.mrb[0].mxu0
    %1129 = vdwg.mxu0
    %1130 = vmatprep.subr.mxu0 0.0
    %1131 = vmatpush1.msra.mxu0 %v56
    %1132 = vmatprep.subr.mxu0 0.0
    %1133 = vmatpush1.msra.mxu0 0.0
    %1134 = vmatprep.subr.mxu0 0.0
    %1135 = vmatpush1.msra.mxu0 0.0
    %1136 = vmatprep.subr.mxu0 0.0
    %1137 = vmatpush1.msra.mxu0 0.0
    %1138 = vmatprep.subr.mxu0 0.0
    %1139 = vmatpush1.msra.mxu0 0.0
    %1140 = vmatprep.subr.mxu0 0.0
    %1141 = vmatpush1.msra.mxu0 0.0
    %1142 = vmatprep.subr.mxu0 0.0
    %1143 = vmatpush1.msra.mxu0 0.0
    %1144 = vmatprep.subr.mxu0 0.0
    %1145 = vmatpush1.msra.mxu0 0.0
    %1146 = vmatprep.subr.mxu0 0.0
    %1147 = vmatpush1.msra.mxu0 0.0
    %1148 = vmatprep.subr.mxu0 0.0
    %1149 = vmatpush1.msra.mxu0 0.0
    %1150 = vmatprep.subr.mxu0 0.0
    %1151 = vmatpush1.msra.mxu0 0.0
    %1152 = vmatprep.subr.mxu0 0.0
    %1153 = vmatpush1.msra.mxu0 0.0
    %1154 = vmatprep.subr.mxu0 0.0
    %1155 = vmatpush1.msra.mxu0 0.0
    %1156 = vmatprep.subr.mxu0 0.0
    %1157 = vmatpush1.msra.mxu0 0.0
    %1158 = vmatprep.subr.mxu0 0.0
    %1159 = vmatpush1.msra.mxu0 0.0
    %1160 = vmatprep.subr.mxu0 0.0
    %1161 = vmatpush1.msra.mxu0 0.0
    %1162 = vmatprep.subr.mxu0 0.0
    %1163 = vmatpush1.msra.mxu0 0.0
    %1164 = vmatprep.subr.mxu0 0.0
    %1165 = vmatpush1.msra.mxu0 0.0
    %1166 = vmatprep.subr.mxu0 0.0
    %1167 = vmatpush1.msra.mxu0 0.0
    %1168 = vmatprep.subr.mxu0 0.0
    %1169 = vmatpush1.msra.mxu0 0.0
    %1170 = vmatprep.subr.mxu0 0.0
    %1171 = vmatpush1.msra.mxu0 0.0
    %1172 = vmatprep.subr.mxu0 0.0
    %1173 = vmatpush1.msra.mxu0 0.0
    %1174 = vmatprep.subr.mxu0 0.0
    %1175 = vmatpush1.msra.mxu0 0.0
    %1176 = vmatprep.subr.mxu0 0.0
    %1177 = vmatpush1.msra.mxu0 0.0
    %1178 = vmatprep.subr.mxu0 0.0
    %1179 = vmatpush1.msra.mxu0 0.0
    %1180 = vmatprep.subr.mxu0 0.0
    %1181 = vmatpush1.msra.mxu0 0.0
    %1182 = vmatprep.subr.mxu0 0.0
    %1183 = vmatpush1.msra.mxu0 0.0
    %1184 = vmatprep.subr.mxu0 0.0
    %1185 = vmatpush1.msra.mxu0 0.0
    %1186 = vmatprep.subr.mxu0 0.0
    %1187 = vmatpush1.msra.mxu0 0.0
    %1188 = vmatprep.subr.mxu0 0.0
    %1189 = vmatpush1.msra.mxu0 0.0
    %1190 = vmatprep.subr.mxu0 0.0
    %1191 = vmatpush1.msra.mxu0 0.0
    %1192 = vmatprep.subr.mxu0 0.0
    %1193 = vmatpush1.msra.mxu0 0.0
    %1194 = vmatprep.mubr.f32.mxu0 0.0
    %1195 = vmatmul.mubr.f32.gmra.mrb[0].mxu0 %v82
    %v1196 = vpop.f32.mrb[0].mxu0
    %v1197 = vadd.f32 %v68, %v1196
    %v1198 = vpop.f32.mrb[0].mxu0
    %1199 = vmatprep.mubr.f32.mxu0 0.0
    %1200 = vmatmul.mubr.f32.gmra.mrb[0].mxu0 %v85
    %v1201 = vpop.f32.mrb[0].mxu0
    %v1202 = vadd.f32 %v73, %v1201
    %v1203 = vpop.f32.mrb[0].mxu0
    %1204 = vmatprep.mubr.f32.mxu0 0.0
    %1205 = vmatmul.mubr.f32.gmra.mrb[0].mxu0 %v88
    %v1206 = vpop.f32.mrb[0].mxu0
    %v1207 = vadd.f32 %v78, %v1206
    %v1208 = vpop.f32.mrb[0].mxu0
    %1209 = vdwg.mxu0
    %1210 = vmatprep.subr.mxu0 0.0
    %1211 = vmatpush1.msra.mxu0 %v57
    %1212 = vmatprep.subr.mxu0 0.0
    %1213 = vmatpush1.msra.mxu0 0.0
    %1214 = vmatprep.subr.mxu0 0.0
    %1215 = vmatpush1.msra.mxu0 0.0
    %1216 = vmatprep.subr.mxu0 0.0
    %1217 = vmatpush1.msra.mxu0 0.0
    %1218 = vmatprep.subr.mxu0 0.0
    %1219 = vmatpush1.msra.mxu0 0.0
    %1220 = vmatprep.subr.mxu0 0.0
    %1221 = vmatpush1.msra.mxu0 0.0
    %1222 = vmatprep.subr.mxu0 0.0
    %1223 = vmatpush1.msra.mxu0 0.0
    %1224 = vmatprep.subr.mxu0 0.0
    %1225 = vmatpush1.msra.mxu0 0.0
    %1226 = vmatprep.subr.mxu0 0.0
    %1227 = vmatpush1.msra.mxu0 0.0
    %1228 = vmatprep.subr.mxu0 0.0
    %1229 = vmatpush1.msra.mxu0 0.0
    %1230 = vmatprep.subr.mxu0 0.0
    %1231 = vmatpush1.msra.mxu0 0.0
    %1232 = vmatprep.subr.mxu0 0.0
    %1233 = vmatpush1.msra.mxu0 0.0
    %1234 = vmatprep.subr.mxu0 0.0
    %1235 = vmatpush1.msra.mxu0 0.0
    %1236 = vmatprep.subr.mxu0 0.0
    %1237 = vmatpush1.msra.mxu0 0.0
    %1238 = vmatprep.subr.mxu0 0.0
    %1239 = vmatpush1.msra.mxu0 0.0
    %1240 = vmatprep.subr.mxu0 0.0
    %1241 = vmatpush1.msra.mxu0 0.0
    %1242 = vmatprep.subr.mxu0 0.0
    %1243 = vmatpush1.msra.mxu0 0.0
    %1244 = vmatprep.subr.mxu0 0.0
    %1245 = vmatpush1.msra.mxu0 0.0
    %1246 = vmatprep.subr.mxu0 0.0
    %1247 = vmatpush1.msra.mxu0 0.0
    %1248 = vmatprep.subr.mxu0 0.0
    %1249 = vmatpush1.msra.mxu0 0.0
    %1250 = vmatprep.subr.mxu0 0.0
    %1251 = vmatpush1.msra.mxu0 0.0
    %1252 = vmatprep.subr.mxu0 0.0
    %1253 = vmatpush1.msra.mxu0 0.0
    %1254 = vmatprep.subr.mxu0 0.0
    %1255 = vmatpush1.msra.mxu0 0.0
    %1256 = vmatprep.subr.mxu0 0.0
    %1257 = vmatpush1.msra.mxu0 0.0
    %1258 = vmatprep.subr.mxu0 0.0
    %1259 = vmatpush1.msra.mxu0 0.0
    %1260 = vmatprep.subr.mxu0 0.0
    %1261 = vmatpush1.msra.mxu0 0.0
    %1262 = vmatprep.subr.mxu0 0.0
    %1263 = vmatpush1.msra.mxu0 0.0
    %1264 = vmatprep.subr.mxu0 0.0
    %1265 = vmatpush1.msra.mxu0 0.0
    %1266 = vmatprep.subr.mxu0 0.0
    %1267 = vmatpush1.msra.mxu0 0.0
    %1268 = vmatprep.subr.mxu0 0.0
    %1269 = vmatpush1.msra.mxu0 0.0
    %1270 = vmatprep.subr.mxu0 0.0
    %1271 = vmatpush1.msra.mxu0 0.0
    %1272 = vmatprep.subr.mxu0 0.0
    %1273 = vmatpush1.msra.mxu0 0.0
    %1274 = vmatprep.mubr.f32.mxu0 0.0
    %1275 = vmatmul.mubr.f32.gmra.mrb[0].mxu0 %v82
    %v1276 = vpop.f32.mrb[0].mxu0
    %v1277 = vadd.f32 %v68, %v1276
    %v1278 = vpop.f32.mrb[0].mxu0
    %1279 = vmatprep.mubr.f32.mxu0 0.0
    %1280 = vmatmul.mubr.f32.gmra.mrb[0].mxu0 %v85
    %v1281 = vpop.f32.mrb[0].mxu0
    %v1282 = vadd.f32 %v73, %v1281
    %v1283 = vpop.f32.mrb[0].mxu0
    %1284 = vmatprep.mubr.f32.mxu0 0.0
    %1285 = vmatmul.mubr.f32.gmra.mrb[0].mxu0 %v88
    %v1286 = vpop.f32.mrb[0].mxu0
    %v1287 = vadd.f32 %v78, %v1286
    %v1288 = vpop.f32.mrb[0].mxu0
    %1289 = vdwg.mxu0
    %1290 = vmatprep.subr.mxu0 0.0
    %1291 = vmatpush1.msra.mxu0 %v58
    %1292 = vmatprep.subr.mxu0 0.0
    %1293 = vmatpush1.msra.mxu0 0.0
    %1294 = vmatprep.subr.mxu0 0.0
    %1295 = vmatpush1.msra.mxu0 0.0
    %1296 = vmatprep.subr.mxu0 0.0
    %1297 = vmatpush1.msra.mxu0 0.0
    %1298 = vmatprep.subr.mxu0 0.0
    %1299 = vmatpush1.msra.mxu0 0.0
    %1300 = vmatprep.subr.mxu0 0.0
    %1301 = vmatpush1.msra.mxu0 0.0
    %1302 = vmatprep.subr.mxu0 0.0
    %1303 = vmatpush1.msra.mxu0 0.0
    %1304 = vmatprep.subr.mxu0 0.0
    %1305 = vmatpush1.msra.mxu0 0.0
    %1306 = vmatprep.subr.mxu0 0.0
    %1307 = vmatpush1.msra.mxu0 0.0
    %1308 = vmatprep.subr.mxu0 0.0
    %1309 = vmatpush1.msra.mxu0 0.0
    %1310 = vmatprep.subr.mxu0 0.0
    %1311 = vmatpush1.msra.mxu0 0.0
    %1312 = vmatprep.subr.mxu0 0.0
    %1313 = vmatpush1.msra.mxu0 0.0
    %1314 = vmatprep.subr.mxu0 0.0
    %1315 = vmatpush1.msra.mxu0 0.0
    %1316 = vmatprep.subr.mxu0 0.0
    %1317 = vmatpush1.msra.mxu0 0.0
    %1318 = vmatprep.subr.mxu0 0.0
    %1319 = vmatpush1.msra.mxu0 0.0
    %1320 = vmatprep.subr.mxu0 0.0
    %1321 = vmatpush1.msra.mxu0 0.0
    %1322 = vmatprep.subr.mxu0 0.0
    %1323 = vmatpush1.msra.mxu0 0.0
    %1324 = vmatprep.subr.mxu0 0.0
    %1325 = vmatpush1.msra.mxu0 0.0
    %1326 = vmatprep.subr.mxu0 0.0
    %1327 = vmatpush1.msra.mxu0 0.0
    %1328 = vmatprep.subr.mxu0 0.0
    %1329 = vmatpush1.msra.mxu0 0.0
    %1330 = vmatprep.subr.mxu0 0.0
    %1331 = vmatpush1.msra.mxu0 0.0
    %1332 = vmatprep.subr.mxu0 0.0
    %1333 = vmatpush1.msra.mxu0 0.0
    %1334 = vmatprep.subr.mxu0 0.0
    %1335 = vmatpush1.msra.mxu0 0.0
    %1336 = vmatprep.subr.mxu0 0.0
    %1337 = vmatpush1.msra.mxu0 0.0
    %1338 = vmatprep.subr.mxu0 0.0
    %1339 = vmatpush1.msra.mxu0 0.0
    %1340 = vmatprep.subr.mxu0 0.0
    %1341 = vmatpush1.msra.mxu0 0.0
    %1342 = vmatprep.subr.mxu0 0.0
    %1343 = vmatpush1.msra.mxu0 0.0
    %1344 = vmatprep.subr.mxu0 0.0
    %1345 = vmatpush1.msra.mxu0 0.0
    %1346 = vmatprep.subr.mxu0 0.0
    %1347 = vmatpush1.msra.mxu0 0.0
    %1348 = vmatprep.subr.mxu0 0.0
    %1349 = vmatpush1.msra.mxu0 0.0
    %1350 = vmatprep.subr.mxu0 0.0
    %1351 = vmatpush1.msra.mxu0 0.0
    %1352 = vmatprep.subr.mxu0 0.0
    %1353 = vmatpush1.msra.mxu0 0.0
    %1354 = vmatprep.mubr.f32.mxu0 0.0
    %1355 = vmatmul.mubr.f32.gmra.mrb[0].mxu0 %v82
    %v1356 = vpop.f32.mrb[0].mxu0
    %v1357 = vadd.f32 %v68, %v1356
    %v1358 = vpop.f32.mrb[0].mxu0
    %1359 = vmatprep.mubr.f32.mxu0 0.0
    %1360 = vmatmul.mubr.f32.gmra.mrb[0].mxu0 %v85
    %v1361 = vpop.f32.mrb[0].mxu0
    %v1362 = vadd.f32 %v73, %v1361
    %v1363 = vpop.f32.mrb[0].mxu0
    %1364 = vmatprep.mubr.f32.mxu0 0.0
    %1365 = vmatmul.mubr.f32.gmra.mrb[0].mxu0 %v88
    %v1366 = vpop.f32.mrb[0].mxu0
    %v1367 = vadd.f32 %v78, %v1366
    %v1368 = vpop.f32.mrb[0].mxu0
    %1369 = vdwg.mxu0
    %v1370 = vrot.slane %v157, 4
    %v1371 = vmax.f32 %v157, %v1370
    %v1372 = vrot.slane %v1371, 2
    %v1373 = vmax.f32 %v1371, %v1372
    %v1374 = vrot.slane %v1373, 1
    %v1375 = vmax.f32 %v1373, %v1374
    %v1376 = vrot.slane %v237, 4
    %v1377 = vmax.f32 %v237, %v1376
    %v1378 = vrot.slane %v1377, 2
    %v1379 = vmax.f32 %v1377, %v1378
    %v1380 = vrot.slane %v1379, 1
    %v1381 = vmax.f32 %v1379, %v1380
    %v1382 = vrot.slane %v317, 4
    %v1383 = vmax.f32 %v317, %v1382
    %v1384 = vrot.slane %v1383, 2
    %v1385 = vmax.f32 %v1383, %v1384
    %v1386 = vrot.slane %v1385, 1
    %v1387 = vmax.f32 %v1385, %v1386
    %v1388 = vrot.slane %v397, 4
    %v1389 = vmax.f32 %v397, %v1388
    %v1390 = vrot.slane %v1389, 2
    %v1391 = vmax.f32 %v1389, %v1390
    %v1392 = vrot.slane %v1391, 1
    %v1393 = vmax.f32 %v1391, %v1392
    %v1394 = vrot.slane %v477, 4
    %v1395 = vmax.f32 %v477, %v1394
    %v1396 = vrot.slane %v1395, 2
    %v1397 = vmax.f32 %v1395, %v1396
    %v1398 = vrot.slane %v1397, 1
    %v1399 = vmax.f32 %v1397, %v1398
    %v1400 = vrot.slane %v557, 4
    %v1401 = vmax.f32 %v557, %v1400
    %v1402 = vrot.slane %v1401, 2
    %v1403 = vmax.f32 %v1401, %v1402
    %v1404 = vrot.slane %v1403, 1
    %v1405 = vmax.f32 %v1403, %v1404
    %v1406 = vrot.slane %v637, 4
    %v1407 = vmax.f32 %v637, %v1406
    %v1408 = vrot.slane %v1407, 2
    %v1409 = vmax.f32 %v1407, %v1408
    %v1410 = vrot.slane %v1409, 1
    %v1411 = vmax.f32 %v1409, %v1410
    %v1412 = vrot.slane %v717, 4
    %v1413 = vmax.f32 %v717, %v1412
    %v1414 = vrot.slane %v1413, 2
    %v1415 = vmax.f32 %v1413, %v1414
    %v1416 = vrot.slane %v1415, 1
    %v1417 = vmax.f32 %v1415, %v1416
    %v1418 = vrot.slane %v797, 4
    %v1419 = vmax.f32 %v797, %v1418
    %v1420 = vrot.slane %v1419, 2
    %v1421 = vmax.f32 %v1419, %v1420
    %v1422 = vrot.slane %v1421, 1
    %v1423 = vmax.f32 %v1421, %v1422
    %v1424 = vrot.slane %v877, 4
    %v1425 = vmax.f32 %v877, %v1424
    %v1426 = vrot.slane %v1425, 2
    %v1427 = vmax.f32 %v1425, %v1426
    %v1428 = vrot.slane %v1427, 1
    %v1429 = vmax.f32 %v1427, %v1428
    %v1430 = vrot.slane %v957, 4
    %v1431 = vmax.f32 %v957, %v1430
    %v1432 = vrot.slane %v1431, 2
    %v1433 = vmax.f32 %v1431, %v1432
    %v1434 = vrot.slane %v1433, 1
    %v1435 = vmax.f32 %v1433, %v1434
    %v1436 = vrot.slane %v1037, 4
    %v1437 = vmax.f32 %v1037, %v1436
    %v1438 = vrot.slane %v1437, 2
    %v1439 = vmax.f32 %v1437, %v1438
    %v1440 = vrot.slane %v1439, 1
    %v1441 = vmax.f32 %v1439, %v1440
    %v1442 = vrot.slane %v1117, 4
    %v1443 = vmax.f32 %v1117, %v1442
    %v1444 = vrot.slane %v1443, 2
    %v1445 = vmax.f32 %v1443, %v1444
    %v1446 = vrot.slane %v1445, 1
    %v1447 = vmax.f32 %v1445, %v1446
    %v1448 = vrot.slane %v1197, 4
    %v1449 = vmax.f32 %v1197, %v1448
    %v1450 = vrot.slane %v1449, 2
    %v1451 = vmax.f32 %v1449, %v1450
    %v1452 = vrot.slane %v1451, 1
    %v1453 = vmax.f32 %v1451, %v1452
    %v1454 = vrot.slane %v1277, 4
    %v1455 = vmax.f32 %v1277, %v1454
    %v1456 = vrot.slane %v1455, 2
    %v1457 = vmax.f32 %v1455, %v1456
    %v1458 = vrot.slane %v1457, 1
    %v1459 = vmax.f32 %v1457, %v1458
    %v1460 = vrot.slane %v1357, 4
    %v1461 = vmax.f32 %v1357, %v1460
    %v1462 = vrot.slane %v1461, 2
    %v1463 = vmax.f32 %v1461, %v1462
    %v1464 = vrot.slane %v1463, 1
    %v1465 = vmax.f32 %v1463, %v1464
    %v1466 = vmul.f32 %v162, %v167
    %v1467 = vmul.f32 %v242, %v247
    %v1468 = vmul.f32 %v322, %v327
    %v1469 = vmul.f32 %v402, %v407
    %v1470 = vmul.f32 %v482, %v487
    %v1471 = vmul.f32 %v562, %v567
    %v1472 = vmul.f32 %v642, %v647
    %v1473 = vmul.f32 %v722, %v727
    %v1474 = vmul.f32 %v802, %v807
    %v1475 = vmul.f32 %v882, %v887
    %v1476 = vmul.f32 %v962, %v967
    %v1477 = vmul.f32 %v1042, %v1047
    %v1478 = vmul.f32 %v1122, %v1127
    %v1479 = vmul.f32 %v1202, %v1207
    %v1480 = vmul.f32 %v1282, %v1287
    %v1481 = vmul.f32 %v1362, %v1367
    %1482 = vadd.xlane.f32.xlu0 %v1466
    %v1483 = vpop.xlane.xlu0 %1482
    %1484 = vadd.xlane.f32.xlu0 %v1467
    %v1485 = vpop.xlane.xlu0 %1484
    %1486 = vadd.xlane.f32.xlu0 %v1468
    %v1487 = vpop.xlane.xlu0 %1486
    %1488 = vadd.xlane.f32.xlu0 %v1469
    %v1489 = vpop.xlane.xlu0 %1488
    %1490 = vadd.xlane.f32.xlu0 %v1470
    %v1491 = vpop.xlane.xlu0 %1490
    %1492 = vadd.xlane.f32.xlu0 %v1471
    %v1493 = vpop.xlane.xlu0 %1492
    %1494 = vadd.xlane.f32.xlu0 %v1472
    %v1495 = vpop.xlane.xlu0 %1494
    %1496 = vadd.xlane.f32.xlu0 %v1473
    %v1497 = vpop.xlane.xlu0 %1496
    %1498 = vadd.xlane.f32.xlu0 %v1474
    %v1499 = vpop.xlane.xlu0 %1498
    %1500 = vadd.xlane.f32.xlu0 %v1475
    %v1501 = vpop.xlane.xlu0 %1500
    %1502 = vadd.xlane.f32.xlu0 %v1476
    %v1503 = vpop.xlane.xlu0 %1502
    %1504 = vadd.xlane.f32.xlu0 %v1477
    %v1505 = vpop.xlane.xlu0 %1504
    %1506 = vadd.xlane.f32.xlu0 %v1478
    %v1507 = vpop.xlane.xlu0 %1506
    %1508 = vadd.xlane.f32.xlu0 %v1479
    %v1509 = vpop.xlane.xlu0 %1508
    %1510 = vadd.xlane.f32.xlu0 %v1480
    %v1511 = vpop.xlane.xlu0 %1510
    %1512 = vadd.xlane.f32.xlu0 %v1481
    %v1513 = vpop.xlane.xlu0 %1512
    %v1514 = vmul.f32 %v162, %v162
    %v1515 = vmul.f32 %v242, %v242
    %v1516 = vmul.f32 %v322, %v322
    %v1517 = vmul.f32 %v402, %v402
    %v1518 = vmul.f32 %v482, %v482
    %v1519 = vmul.f32 %v562, %v562
    %v1520 = vmul.f32 %v642, %v642
    %v1521 = vmul.f32 %v722, %v722
    %v1522 = vmul.f32 %v802, %v802
    %v1523 = vmul.f32 %v882, %v882
    %v1524 = vmul.f32 %v962, %v962
    %v1525 = vmul.f32 %v1042, %v1042
    %v1526 = vmul.f32 %v1122, %v1122
    %v1527 = vmul.f32 %v1202, %v1202
    %v1528 = vmul.f32 %v1282, %v1282
    %v1529 = vmul.f32 %v1362, %v1362
    %1530 = vadd.xlane.f32.xlu0 %v1514
    %v1531 = vpop.xlane.xlu0 %1530
    %1532 = vadd.xlane.f32.xlu0 %v1515
    %v1533 = vpop.xlane.xlu0 %1532
    %1534 = vadd.xlane.f32.xlu0 %v1516
    %v1535 = vpop.xlane.xlu0 %1534
    %1536 = vadd.xlane.f32.xlu0 %v1517
    %v1537 = vpop.xlane.xlu0 %1536
    %1538 = vadd.xlane.f32.xlu0 %v1518
    %v1539 = vpop.xlane.xlu0 %1538
    %1540 = vadd.xlane.f32.xlu0 %v1519
    %v1541 = vpop.xlane.xlu0 %1540
    %1542 = vadd.xlane.f32.xlu0 %v1520
    %v1543 = vpop.xlane.xlu0 %1542
    %1544 = vadd.xlane.f32.xlu0 %v1521
    %v1545 = vpop.xlane.xlu0 %1544
    %1546 = vadd.xlane.f32.xlu0 %v1522
    %v1547 = vpop.xlane.xlu0 %1546
    %1548 = vadd.xlane.f32.xlu0 %v1523
    %v1549 = vpop.xlane.xlu0 %1548
    %1550 = vadd.xlane.f32.xlu0 %v1524
    %v1551 = vpop.xlane.xlu0 %1550
    %1552 = vadd.xlane.f32.xlu0 %v1525
    %v1553 = vpop.xlane.xlu0 %1552
    %1554 = vadd.xlane.f32.xlu0 %v1526
    %v1555 = vpop.xlane.xlu0 %1554
    %1556 = vadd.xlane.f32.xlu0 %v1527
    %v1557 = vpop.xlane.xlu0 %1556
    %1558 = vadd.xlane.f32.xlu0 %v1528
    %v1559 = vpop.xlane.xlu0 %1558
    %1560 = vadd.xlane.f32.xlu0 %v1529
    %v1561 = vpop.xlane.xlu0 %1560
    %v1562 = vmul.f32 %v167, %v167
    %v1563 = vmul.f32 %v247, %v247
    %v1564 = vmul.f32 %v327, %v327
    %v1565 = vmul.f32 %v407, %v407
    %v1566 = vmul.f32 %v487, %v487
    %v1567 = vmul.f32 %v567, %v567
    %v1568 = vmul.f32 %v647, %v647
    %v1569 = vmul.f32 %v727, %v727
    %v1570 = vmul.f32 %v807, %v807
    %v1571 = vmul.f32 %v887, %v887
    %v1572 = vmul.f32 %v967, %v967
    %v1573 = vmul.f32 %v1047, %v1047
    %v1574 = vmul.f32 %v1127, %v1127
    %v1575 = vmul.f32 %v1207, %v1207
    %v1576 = vmul.f32 %v1287, %v1287
    %v1577 = vmul.f32 %v1367, %v1367
    %1578 = vadd.xlane.f32.xlu0 %v1562
    %v1579 = vpop.xlane.xlu0 %1578
    %1580 = vadd.xlane.f32.xlu0 %v1563
    %v1581 = vpop.xlane.xlu0 %1580
    %1582 = vadd.xlane.f32.xlu0 %v1564
    %v1583 = vpop.xlane.xlu0 %1582
    %1584 = vadd.xlane.f32.xlu0 %v1565
    %v1585 = vpop.xlane.xlu0 %1584
    %1586 = vadd.xlane.f32.xlu0 %v1566
    %v1587 = vpop.xlane.xlu0 %1586
    %1588 = vadd.xlane.f32.xlu0 %v1567
    %v1589 = vpop.xlane.xlu0 %1588
    %1590 = vadd.xlane.f32.xlu0 %v1568
    %v1591 = vpop.xlane.xlu0 %1590
    %1592 = vadd.xlane.f32.xlu0 %v1569
    %v1593 = vpop.xlane.xlu0 %1592
    %1594 = vadd.xlane.f32.xlu0 %v1570
    %v1595 = vpop.xlane.xlu0 %1594
    %1596 = vadd.xlane.f32.xlu0 %v1571
    %v1597 = vpop.xlane.xlu0 %1596
    %1598 = vadd.xlane.f32.xlu0 %v1572
    %v1599 = vpop.xlane.xlu0 %1598
    %1600 = vadd.xlane.f32.xlu0 %v1573
    %v1601 = vpop.xlane.xlu0 %1600
    %1602 = vadd.xlane.f32.xlu0 %v1574
    %v1603 = vpop.xlane.xlu0 %1602
    %1604 = vadd.xlane.f32.xlu0 %v1575
    %v1605 = vpop.xlane.xlu0 %1604
    %1606 = vadd.xlane.f32.xlu0 %v1576
    %v1607 = vpop.xlane.xlu0 %1606
    %1608 = vadd.xlane.f32.xlu0 %v1577
    %v1609 = vpop.xlane.xlu0 %1608
    %v1610 = vmul.f32 %v1531, %v1579
    %v1611 = vmul.f32 %v1533, %v1581
    %v1612 = vmul.f32 %v1535, %v1583
    %v1613 = vmul.f32 %v1537, %v1585
    %v1614 = vmul.f32 %v1539, %v1587
    %v1615 = vmul.f32 %v1541, %v1589
    %v1616 = vmul.f32 %v1543, %v1591
    %v1617 = vmul.f32 %v1545, %v1593
    %v1618 = vmul.f32 %v1547, %v1595
    %v1619 = vmul.f32 %v1549, %v1597
    %v1620 = vmul.f32 %v1551, %v1599
    %v1621 = vmul.f32 %v1553, %v1601
    %v1622 = vmul.f32 %v1555, %v1603
    %v1623 = vmul.f32 %v1557, %v1605
    %v1624 = vmul.f32 %v1559, %v1607
    %v1625 = vmul.f32 %v1561, %v1609
    %v1626 = vmax.f32 %v1610, 1e-16
    %v1627 = vmax.f32 %v1611, 1e-16
    %v1628 = vmax.f32 %v1612, 1e-16
    %v1629 = vmax.f32 %v1613, 1e-16
    %v1630 = vmax.f32 %v1614, 1e-16
    %v1631 = vmax.f32 %v1615, 1e-16
    %v1632 = vmax.f32 %v1616, 1e-16
    %v1633 = vmax.f32 %v1617, 1e-16
    %v1634 = vmax.f32 %v1618, 1e-16
    %v1635 = vmax.f32 %v1619, 1e-16
    %v1636 = vmax.f32 %v1620, 1e-16
    %v1637 = vmax.f32 %v1621, 1e-16
    %v1638 = vmax.f32 %v1622, 1e-16
    %v1639 = vmax.f32 %v1623, 1e-16
    %v1640 = vmax.f32 %v1624, 1e-16
    %v1641 = vmax.f32 %v1625, 1e-16
    %v1642 = vrsqrt.pop %v1626
    %v1643 = vrsqrt.pop %v1627
    %v1644 = vrsqrt.pop %v1628
    %v1645 = vrsqrt.pop %v1629
    %v1646 = vrsqrt.pop %v1630
    %v1647 = vrsqrt.pop %v1631
    %v1648 = vrsqrt.pop %v1632
    %v1649 = vrsqrt.pop %v1633
    %v1650 = vrsqrt.pop %v1634
    %v1651 = vrsqrt.pop %v1635
    %v1652 = vrsqrt.pop %v1636
    %v1653 = vrsqrt.pop %v1637
    %v1654 = vrsqrt.pop %v1638
    %v1655 = vrsqrt.pop %v1639
    %v1656 = vrsqrt.pop %v1640
    %v1657 = vrsqrt.pop %v1641
    %v1658 = vmul.f32 %v1483, %v1642
    %v1659 = vmul.f32 %v1485, %v1643
    %v1660 = vmul.f32 %v1487, %v1644
    %v1661 = vmul.f32 %v1489, %v1645
    %v1662 = vmul.f32 %v1491, %v1646
    %v1663 = vmul.f32 %v1493, %v1647
    %v1664 = vmul.f32 %v1495, %v1648
    %v1665 = vmul.f32 %v1497, %v1649
    %v1666 = vmul.f32 %v1499, %v1650
    %v1667 = vmul.f32 %v1501, %v1651
    %v1668 = vmul.f32 %v1503, %v1652
    %v1669 = vmul.f32 %v1505, %v1653
    %v1670 = vmul.f32 %v1507, %v1654
    %v1671 = vmul.f32 %v1509, %v1655
    %v1672 = vmul.f32 %v1511, %v1656
    %v1673 = vmul.f32 %v1513, %v1657
    %v1674 = vld [vmem:[#allocation2] sm:$0xff]
    %v1675 = vld [vmem:[#allocation2 + $0x8] sm:$0xff]
    %v1676 = vld [vmem:[#allocation2 + $0x10] sm:$0xff]
    %v1677 = vld [vmem:[#allocation2 + $0x18] sm:$0xff]
    %v1678 = vld [vmem:[#allocation2 + $0x20] sm:$0xff]
    %v1679 = vld [vmem:[#allocation2 + $0x28] sm:$0xff]
    %v1680 = vld [vmem:[#allocation2 + $0x30] sm:$0xff]
    %v1681 = vld [vmem:[#allocation2 + $0x38] sm:$0xff]
    %v1682 = vld [vmem:[#allocation2 + $0x40] sm:$0xff]
    %v1683 = vld [vmem:[#allocation2 + $0x48] sm:$0xff]
    %v1684 = vld [vmem:[#allocation2 + $0x50] sm:$0xff]
    %v1685 = vld [vmem:[#allocation2 + $0x58] sm:$0xff]
    %v1686 = vld [vmem:[#allocation2 + $0x60] sm:$0xff]
    %v1687 = vld [vmem:[#allocation2 + $0x68] sm:$0xff]
    %v1688 = vld [vmem:[#allocation2 + $0x70] sm:$0xff]
    %v1689 = vld [vmem:[#allocation2 + $0x78] sm:$0xff]
    %v1690 = vld [vmem:[%s4] sm:$0xff]
    %v1707 = vlaneseq
    %v1708 = vand.u32 %v1707, 127
    %v1709 = vlaneseq
    %v1710 = vshrl.u32 %v1709, 7
    %v1711 = vsub.s32 %v1708, %v1710
    %v1712 = vrot.slane %v1658, %v1711
    %v1713 = vlaneseq
    %v1714 = vshrl.u32 %v1713, 7
    %v1715 = vsub.s32 %v1708, %v1714
    %v1716 = vrot.slane %v1659, %v1715
    %v1717 = vlaneseq
    %v1718 = vshrl.u32 %v1717, 7
    %v1719 = vsub.s32 %v1708, %v1718
    %v1720 = vrot.slane %v1660, %v1719
    %v1721 = vlaneseq
    %v1722 = vshrl.u32 %v1721, 7
    %v1723 = vsub.s32 %v1708, %v1722
    %v1724 = vrot.slane %v1661, %v1723
    %v1725 = vlaneseq
    %v1726 = vshrl.u32 %v1725, 7
    %v1727 = vsub.s32 %v1708, %v1726
    %v1728 = vrot.slane %v1662, %v1727
    %v1729 = vlaneseq
    %v1730 = vshrl.u32 %v1729, 7
    %v1731 = vsub.s32 %v1708, %v1730
    %v1732 = vrot.slane %v1663, %v1731
    %v1733 = vlaneseq
    %v1734 = vshrl.u32 %v1733, 7
    %v1735 = vsub.s32 %v1708, %v1734
    %v1736 = vrot.slane %v1664, %v1735
    %v1737 = vlaneseq
    %v1738 = vshrl.u32 %v1737, 7
    %v1739 = vsub.s32 %v1708, %v1738
    %v1740 = vrot.slane %v1665, %v1739
    %v1741 = vlaneseq
    %v1742 = vshrl.u32 %v1741, 7
    %v1743 = vsub.s32 %v1708, %v1742
    %v1744 = vrot.slane %v1666, %v1743
    %v1745 = vlaneseq
    %v1746 = vshrl.u32 %v1745, 7
    %v1747 = vsub.s32 %v1708, %v1746
    %v1748 = vrot.slane %v1667, %v1747
    %v1749 = vlaneseq
    %v1750 = vshrl.u32 %v1749, 7
    %v1751 = vsub.s32 %v1708, %v1750
    %v1752 = vrot.slane %v1668, %v1751
    %v1753 = vlaneseq
    %v1754 = vshrl.u32 %v1753, 7
    %v1755 = vsub.s32 %v1708, %v1754
    %v1756 = vrot.slane %v1669, %v1755
    %v1757 = vlaneseq
    %v1758 = vshrl.u32 %v1757, 7
    %v1759 = vsub.s32 %v1708, %v1758
    %v1760 = vrot.slane %v1670, %v1759
    %v1761 = vlaneseq
    %v1762 = vshrl.u32 %v1761, 7
    %v1763 = vsub.s32 %v1708, %v1762
    %v1764 = vrot.slane %v1671, %v1763
    %v1765 = vlaneseq
    %v1766 = vshrl.u32 %v1765, 7
    %v1767 = vsub.s32 %v1708, %v1766
    %v1768 = vrot.slane %v1672, %v1767
    %v1769 = vlaneseq
    %v1770 = vshrl.u32 %v1769, 7
    %v1771 = vsub.s32 %v1708, %v1770
    %v1772 = vrot.slane %v1673, %v1771
    %vm1773 = vcmask 1041409
    %v1774 = vsel %vm1773, %v1716, %v1712
    %vm1775 = vcmask 1042434
    %v1776 = vsel %vm1775, %v1720, %v1774
    %vm1777 = vcmask 1043459
    %v1778 = vsel %vm1777, %v1724, %v1776
    %vm1779 = vcmask 1044484
    %v1780 = vsel %vm1779, %v1728, %v1778
    %vm1781 = vcmask 1045509
    %v1782 = vsel %vm1781, %v1732, %v1780
    %vm1783 = vcmask 1046534
    %v1784 = vsel %vm1783, %v1736, %v1782
    %vm1785 = vcmask 1047559
    %v1786 = vsel %vm1785, %v1740, %v1784
    %v1787 = vsel %vm1773, %v1748, %v1744
    %v1788 = vsel %vm1775, %v1752, %v1787
    %v1789 = vsel %vm1777, %v1756, %v1788
    %v1790 = vsel %vm1779, %v1760, %v1789
    %v1791 = vsel %vm1781, %v1764, %v1790
    %v1792 = vsel %vm1783, %v1768, %v1791
    %v1793 = vsel %vm1785, %v1772, %v1792
    %v1794 = vsel %vm80, %v1786, 0
    %v1796 = vsel %vm80, %v1793, 0
    %1798 = vmatprep.subr.mxu0 0.0
    %1799 = vmatpush1.msra.mxu0 %v1690
    %1800 = vmatprep.subr.mxu0 0.0
    %1801 = vmatpush1.msra.mxu0 0.0
    %1802 = vmatprep.subr.mxu0 0.0
    %1803 = vmatpush1.msra.mxu0 0.0
    %1804 = vmatprep.subr.mxu0 0.0
    %1805 = vmatpush1.msra.mxu0 0.0
    %1806 = vmatprep.subr.mxu0 0.0
    %1807 = vmatpush1.msra.mxu0 0.0
    %1808 = vmatprep.subr.mxu0 0.0
    %1809 = vmatpush1.msra.mxu0 0.0
    %1810 = vmatprep.subr.mxu0 0.0
    %1811 = vmatpush1.msra.mxu0 0.0
    %1812 = vmatprep.subr.mxu0 0.0
    %1813 = vmatpush1.msra.mxu0 0.0
    %1814 = vmatprep.subr.mxu0 0.0
    %1815 = vmatpush1.msra.mxu0 0.0
    %1816 = vmatprep.subr.mxu0 0.0
    %1817 = vmatpush1.msra.mxu0 0.0
    %1818 = vmatprep.subr.mxu0 0.0
    %1819 = vmatpush1.msra.mxu0 0.0
    %1820 = vmatprep.subr.mxu0 0.0
    %1821 = vmatpush1.msra.mxu0 0.0
    %1822 = vmatprep.subr.mxu0 0.0
    %1823 = vmatpush1.msra.mxu0 0.0
    %1824 = vmatprep.subr.mxu0 0.0
    %1825 = vmatpush1.msra.mxu0 0.0
    %1826 = vmatprep.subr.mxu0 0.0
    %1827 = vmatpush1.msra.mxu0 0.0
    %1828 = vmatprep.subr.mxu0 0.0
    %1829 = vmatpush1.msra.mxu0 0.0
    %1830 = vmatprep.subr.mxu0 0.0
    %1831 = vmatpush1.msra.mxu0 0.0
    %1832 = vmatprep.subr.mxu0 0.0
    %1833 = vmatpush1.msra.mxu0 0.0
    %1834 = vmatprep.subr.mxu0 0.0
    %1835 = vmatpush1.msra.mxu0 0.0
    %1836 = vmatprep.subr.mxu0 0.0
    %1837 = vmatpush1.msra.mxu0 0.0
    %1838 = vmatprep.subr.mxu0 0.0
    %1839 = vmatpush1.msra.mxu0 0.0
    %1840 = vmatprep.subr.mxu0 0.0
    %1841 = vmatpush1.msra.mxu0 0.0
    %1842 = vmatprep.subr.mxu0 0.0
    %1843 = vmatpush1.msra.mxu0 0.0
    %1844 = vmatprep.subr.mxu0 0.0
    %1845 = vmatpush1.msra.mxu0 0.0
    %1846 = vmatprep.subr.mxu0 0.0
    %1847 = vmatpush1.msra.mxu0 0.0
    %1848 = vmatprep.subr.mxu0 0.0
    %1849 = vmatpush1.msra.mxu0 0.0
    %1850 = vmatprep.subr.mxu0 0.0
    %1851 = vmatpush1.msra.mxu0 0.0
    %1852 = vmatprep.subr.mxu0 0.0
    %1853 = vmatpush1.msra.mxu0 0.0
    %1854 = vmatprep.subr.mxu0 0.0
    %1855 = vmatpush1.msra.mxu0 0.0
    %1856 = vmatprep.subr.mxu0 0.0
    %1857 = vmatpush1.msra.mxu0 0.0
    %1858 = vmatprep.subr.mxu0 0.0
    %1859 = vmatpush1.msra.mxu0 0.0
    %1860 = vmatprep.subr.mxu0 0.0
    %1861 = vmatpush1.msra.mxu0 0.0
    %1862 = vmatprep.mubr.f32.mxu0 0.0
    %1863 = vmatmul.mubr.f32.gmra.mrb[0].mxu0 %v1794
    %v1864 = vpop.f32.mrb[0].mxu0
    %v1865 = vadd.f32 0.0, %v1864
    %v1866 = vpop.f32.mrb[0].mxu0
    %1867 = vmatprep.mubr.f32.mxu0 0.0
    %1868 = vmatmul.mubr.f32.gmra.mrb[0].mxu0 %v1796
    %v1869 = vpop.f32.mrb[0].mxu0
    %v1870 = vadd.f32 0.0, %v1869
    %v1871 = vpop.f32.mrb[0].mxu0
    %1872 = vdwg.mxu0
    %v1889 = vsel %vm1773, %v1381, %v1375
    %v1890 = vsel %vm1775, %v1387, %v1889
    %v1891 = vsel %vm1777, %v1393, %v1890
    %v1892 = vsel %vm1779, %v1399, %v1891
    %v1893 = vsel %vm1781, %v1405, %v1892
    %v1894 = vsel %vm1783, %v1411, %v1893
    %v1895 = vsel %vm1785, %v1417, %v1894
    %v1896 = vsel %vm1773, %v1429, %v1423
    %v1897 = vsel %vm1775, %v1435, %v1896
    %v1898 = vsel %vm1777, %v1441, %v1897
    %v1899 = vsel %vm1779, %v1447, %v1898
    %v1900 = vsel %vm1781, %v1453, %v1899
    %v1901 = vsel %vm1783, %v1459, %v1900
    %v1902 = vsel %vm1785, %v1465, %v1901
    %1905 = vmatprep.subr.mxu0 0.0
    %1906 = vmatpush1.msra.mxu0 %v1674
    %1907 = vmatprep.subr.mxu0 0.0
    %1908 = vmatpush1.msra.mxu0 %v1675
    %1909 = vmatprep.subr.mxu0 0.0
    %1910 = vmatpush1.msra.mxu0 %v1676
    %1911 = vmatprep.subr.mxu0 0.0
    %1912 = vmatpush1.msra.mxu0 %v1677
    %1913 = vmatprep.subr.mxu0 0.0
    %1914 = vmatpush1.msra.mxu0 %v1678
    %1915 = vmatprep.subr.mxu0 0.0
    %1916 = vmatpush1.msra.mxu0 %v1679
    %1917 = vmatprep.subr.mxu0 0.0
    %1918 = vmatpush1.msra.mxu0 %v1680
    %1919 = vmatprep.subr.mxu0 0.0
    %1920 = vmatpush1.msra.mxu0 %v1681
    %1921 = vmatprep.subr.mxu0 0.0
    %1922 = vmatpush1.msra.mxu0 %v1682
    %1923 = vmatprep.subr.mxu0 0.0
    %1924 = vmatpush1.msra.mxu0 %v1683
    %1925 = vmatprep.subr.mxu0 0.0
    %1926 = vmatpush1.msra.mxu0 %v1684
    %1927 = vmatprep.subr.mxu0 0.0
    %1928 = vmatpush1.msra.mxu0 %v1685
    %1929 = vmatprep.subr.mxu0 0.0
    %1930 = vmatpush1.msra.mxu0 %v1686
    %1931 = vmatprep.subr.mxu0 0.0
    %1932 = vmatpush1.msra.mxu0 %v1687
    %1933 = vmatprep.subr.mxu0 0.0
    %1934 = vmatpush1.msra.mxu0 %v1688
    %1935 = vmatprep.subr.mxu0 0.0
    %1936 = vmatpush1.msra.mxu0 %v1689
    %1937 = vmatprep.subr.mxu0 0.0
    %1938 = vmatpush1.msra.mxu0 0.0
    %1939 = vmatprep.subr.mxu0 0.0
    %1940 = vmatpush1.msra.mxu0 0.0
    %1941 = vmatprep.subr.mxu0 0.0
    %1942 = vmatpush1.msra.mxu0 0.0
    %1943 = vmatprep.subr.mxu0 0.0
    %1944 = vmatpush1.msra.mxu0 0.0
    %1945 = vmatprep.subr.mxu0 0.0
    %1946 = vmatpush1.msra.mxu0 0.0
    %1947 = vmatprep.subr.mxu0 0.0
    %1948 = vmatpush1.msra.mxu0 0.0
    %1949 = vmatprep.subr.mxu0 0.0
    %1950 = vmatpush1.msra.mxu0 0.0
    %1951 = vmatprep.subr.mxu0 0.0
    %1952 = vmatpush1.msra.mxu0 0.0
    %1953 = vmatprep.subr.mxu0 0.0
    %1954 = vmatpush1.msra.mxu0 0.0
    %1955 = vmatprep.subr.mxu0 0.0
    %1956 = vmatpush1.msra.mxu0 0.0
    %1957 = vmatprep.subr.mxu0 0.0
    %1958 = vmatpush1.msra.mxu0 0.0
    %1959 = vmatprep.subr.mxu0 0.0
    %1960 = vmatpush1.msra.mxu0 0.0
    %1961 = vmatprep.subr.mxu0 0.0
    %1962 = vmatpush1.msra.mxu0 0.0
    %1963 = vmatprep.subr.mxu0 0.0
    %1964 = vmatpush1.msra.mxu0 0.0
    %1965 = vmatprep.subr.mxu0 0.0
    %1966 = vmatpush1.msra.mxu0 0.0
    %1967 = vmatprep.subr.mxu0 0.0
    %1968 = vmatpush1.msra.mxu0 0.0
    %1969 = vmatprep.mubr.f32.mxu0 0.0
    %1970 = vmatmul.mubr.f32.gmra.mrb[0].mxu0 %v1895
    %v1971 = vpop.f32.mrb[0].mxu0
    %v1972 = vadd.f32 %v1865, %v1971
    %v1973 = vpop.f32.mrb[0].mxu0
    %1974 = vmatprep.mubr.f32.mxu0 0.0
    %1975 = vmatmul.mubr.f32.gmra.mrb[0].mxu0 %v1902
    %v1976 = vpop.f32.mrb[0].mxu0
    %v1977 = vadd.f32 %v1870, %v1976
    %v1978 = vpop.f32.mrb[0].mxu0
    %1979 = vdwg.mxu0
    %v1980 = vld [vmem:[%s5] sm:$0x1]
    %v1982 = vlaneseq
    %v1983 = vshrl.u32 %v1982, 7
    %v1984 = vsub.s32 0, %v1983
    %v1985 = vrot.slane %v1980, %v1984
    %v1987 = vadd.f32 %v1972, %v1985
    %v1988 = vadd.f32 %v1977, %v1985
    %v1989 = vmax.f32 %v1987, 0.0
    %v1990 = vmax.f32 %v1988, 0.0
    %v1991 = vld [vmem:[%s6] sm:$0xff]
    %v1992 = vld [vmem:[%s6 + $0x8] sm:$0xff]
    %v1993 = vld [vmem:[%s6 + $0x10] sm:$0xff]
    %v1994 = vld [vmem:[%s6 + $0x18] sm:$0xff]
    %v1995 = vld [vmem:[%s6 + $0x20] sm:$0xff]
    %v1996 = vld [vmem:[%s6 + $0x28] sm:$0xff]
    %v1997 = vld [vmem:[%s6 + $0x30] sm:$0xff]
    %v1998 = vld [vmem:[%s6 + $0x38] sm:$0xff]
    %v1999 = vld [vmem:[%s6 + $0x40] sm:$0xff]
    %v2000 = vld [vmem:[%s6 + $0x48] sm:$0xff]
    %v2001 = vld [vmem:[%s6 + $0x50] sm:$0xff]
    %v2002 = vld [vmem:[%s6 + $0x58] sm:$0xff]
    %v2003 = vld [vmem:[%s6 + $0x60] sm:$0xff]
    %v2004 = vld [vmem:[%s6 + $0x68] sm:$0xff]
    %v2005 = vld [vmem:[%s6 + $0x70] sm:$0xff]
    %v2006 = vld [vmem:[%s6 + $0x78] sm:$0xff]
    %v2007 = vld [vmem:[%s7] sm:$0x1]
    %v2009 = vlaneseq
    %v2010 = vshrl.u32 %v2009, 7
    %v2011 = vsub.s32 0, %v2010
    %v2012 = vrot.slane %v2007, %v2011
    %2014 = vmatprep.subr.mxu0 0.0
    %2015 = vmatpush1.msra.mxu0 %v1991
    %2016 = vmatprep.subr.mxu0 0.0
    %2017 = vmatpush1.msra.mxu0 %v1992
    %2018 = vmatprep.subr.mxu0 0.0
    %2019 = vmatpush1.msra.mxu0 %v1993
    %2020 = vmatprep.subr.mxu0 0.0
    %2021 = vmatpush1.msra.mxu0 %v1994
    %2022 = vmatprep.subr.mxu0 0.0
    %2023 = vmatpush1.msra.mxu0 %v1995
    %2024 = vmatprep.subr.mxu0 0.0
    %2025 = vmatpush1.msra.mxu0 %v1996
    %2026 = vmatprep.subr.mxu0 0.0
    %2027 = vmatpush1.msra.mxu0 %v1997
    %2028 = vmatprep.subr.mxu0 0.0
    %2029 = vmatpush1.msra.mxu0 %v1998
    %2030 = vmatprep.subr.mxu0 0.0
    %2031 = vmatpush1.msra.mxu0 %v1999
    %2032 = vmatprep.subr.mxu0 0.0
    %2033 = vmatpush1.msra.mxu0 %v2000
    %2034 = vmatprep.subr.mxu0 0.0
    %2035 = vmatpush1.msra.mxu0 %v2001
    %2036 = vmatprep.subr.mxu0 0.0
    %2037 = vmatpush1.msra.mxu0 %v2002
    %2038 = vmatprep.subr.mxu0 0.0
    %2039 = vmatpush1.msra.mxu0 %v2003
    %2040 = vmatprep.subr.mxu0 0.0
    %2041 = vmatpush1.msra.mxu0 %v2004
    %2042 = vmatprep.subr.mxu0 0.0
    %2043 = vmatpush1.msra.mxu0 %v2005
    %2044 = vmatprep.subr.mxu0 0.0
    %2045 = vmatpush1.msra.mxu0 %v2006
    %2046 = vmatprep.subr.mxu0 0.0
    %2047 = vmatpush1.msra.mxu0 0.0
    %2048 = vmatprep.subr.mxu0 0.0
    %2049 = vmatpush1.msra.mxu0 0.0
    %2050 = vmatprep.subr.mxu0 0.0
    %2051 = vmatpush1.msra.mxu0 0.0
    %2052 = vmatprep.subr.mxu0 0.0
    %2053 = vmatpush1.msra.mxu0 0.0
    %2054 = vmatprep.subr.mxu0 0.0
    %2055 = vmatpush1.msra.mxu0 0.0
    %2056 = vmatprep.subr.mxu0 0.0
    %2057 = vmatpush1.msra.mxu0 0.0
    %2058 = vmatprep.subr.mxu0 0.0
    %2059 = vmatpush1.msra.mxu0 0.0
    %2060 = vmatprep.subr.mxu0 0.0
    %2061 = vmatpush1.msra.mxu0 0.0
    %2062 = vmatprep.subr.mxu0 0.0
    %2063 = vmatpush1.msra.mxu0 0.0
    %2064 = vmatprep.subr.mxu0 0.0
    %2065 = vmatpush1.msra.mxu0 0.0
    %2066 = vmatprep.subr.mxu0 0.0
    %2067 = vmatpush1.msra.mxu0 0.0
    %2068 = vmatprep.subr.mxu0 0.0
    %2069 = vmatpush1.msra.mxu0 0.0
    %2070 = vmatprep.subr.mxu0 0.0
    %2071 = vmatpush1.msra.mxu0 0.0
    %2072 = vmatprep.subr.mxu0 0.0
    %2073 = vmatpush1.msra.mxu0 0.0
    %2074 = vmatprep.subr.mxu0 0.0
    %2075 = vmatpush1.msra.mxu0 0.0
    %2076 = vmatprep.subr.mxu0 0.0
    %2077 = vmatpush1.msra.mxu0 0.0
    %2078 = vmatprep.mubr.f32.mxu0 0.0
    %2079 = vmatmul.mubr.f32.gmra.mrb[0].mxu0 %v1989
    %v2080 = vpop.f32.mrb[0].mxu0
    %v2081 = vadd.f32 %v2012, %v2080
    %v2082 = vpop.f32.mrb[0].mxu0
    %2083 = vmatprep.mubr.f32.mxu0 0.0
    %2084 = vmatmul.mubr.f32.gmra.mrb[0].mxu0 %v1990
    %v2085 = vpop.f32.mrb[0].mxu0
    %v2086 = vadd.f32 %v2012, %v2085
    %v2087 = vpop.f32.mrb[0].mxu0
    %2088 = vdwg.mxu0
    %v2089 = vmul.f32 %v2081, 0.8
    %v2090 = vmul.f32 %v2086, 0.8
    %vm2091 = vcmask 15360
    %2092 = vst.msk [vmem:[%s8] sm:$0xff] %vm2091, %v2089
    %2093 = vst.msk [vmem:[%s8 + $0x8] sm:$0xff] %vm2091, %v2090
    // Predicated region
    $region38: #{tpu_custom_call.1} parent=1 // pred_check
      _
    $region39: #{tpu_custom_call.1} parent=1 // pred_check_branch
      %2095 = sbr.rel (0) target = $region41
    $region40: #{tpu_custom_call.1} parent=1 // pred_region
      _
    $region41: #{tpu_custom_call.1} parent=1 // pred_fallthru
      _
    // Predicated region
    $region42: #{tpu_custom_call.1} parent=1 // pred_check
      _
    $region43: #{tpu_custom_call.1} parent=1 // pred_check_branch
      %2097 = sbr.rel (0) target = $region45
    $region44: #{tpu_custom_call.1} parent=1 // pred_region
      _
    $region45: #{tpu_custom_call.1} parent=1 // pred_fallthru
      _
    %2098 = vsyncpa [#allocation3], 1

</llo_original>
